<compile_context>
chip_gen: v5e
topology: v5e:2x2
jax: 0.10.0
libtpu: 0.0.40
codegen_flags: <defaults>
</compile_context>

<pallas_src>
import jax
import jax.numpy as jnp
from jax.experimental import pallas as pl
from jax.experimental.pallas import tpu as pltpu


# ----------------------------------------------------------------------------
# Fused Pallas kernel
# ----------------------------------------------------------------------------
def _make_fused_kernel(num_layers):
    """Build the fused forward kernel for a fixed number of LSTM layers.

    Ref layout (positional):
      x_ref                      (T, BB, E)  bf16   time-major batch block
      [w_ih_t, w_hh_t, b] x L    (D,4H) bf16 / (H,4H) bf16 / (1,4H) f32
      w_fc_ref                   (O, H)      f32
      b_fc_ref                   (1, O)      f32
      o_ref                      (BB, O)     f32    output block
      xw_scr                     (T, BB, 4H) bf16   scratch (hoisted input projection)
      h_scr                      (T, BB, H)  bf16   scratch (inter-layer activations,
                                                    only present if num_layers > 1)
    """
    has_hscr = num_layers > 1

    def kernel(*refs):
        x_ref = refs[0]
        layer_refs = refs[1:1 + 3 * num_layers]
        w_fc_ref = refs[1 + 3 * num_layers]
        b_fc_ref = refs[2 + 3 * num_layers]
        o_ref = refs[3 + 3 * num_layers]
        xw_scr = refs[4 + 3 * num_layers]
        h_scr = refs[5 + 3 * num_layers] if has_hscr else None

        T, BB, H4 = xw_scr.shape
        H = H4 // 4
        E = x_ref.shape[-1]

        def gate_math(gates, c_prev):
            # H is a multiple of 128 -> these lane slices are tile-aligned (free).
            i_g = jax.nn.sigmoid(gates[:, 0 * H:1 * H])
            f_g = jax.nn.sigmoid(gates[:, 1 * H:2 * H])
            g_g = jnp.tanh(gates[:, 2 * H:3 * H])
            o_g = jax.nn.sigmoid(gates[:, 3 * H:4 * H])
            c = f_g * c_prev + i_g * g_g
            h = o_g * jnp.tanh(c)
            return h, c

        # Layer input as a (T*BB, D) bf16 matrix (time-major rows).
        layer_in = x_ref[...].reshape(T * BB, E)

        h = jnp.zeros((BB, H), jnp.float32)
        for layer in range(num_layers):
            w_ih_ref = layer_refs[3 * layer]       # (D, 4H) bf16
            w_hh_ref = layer_refs[3 * layer + 1]   # (H, 4H) bf16
            b_ref = layer_refs[3 * layer + 2]      # (1, 4H) f32
            is_last = layer == num_layers - 1

            # Hoisted input projection for ALL timesteps: one big MXU matmul.
            # Bias folded in; pre-activations stored as bf16 (halves scratch VMEM).
            xw = jnp.dot(layer_in, w_ih_ref[...],
                         preferred_element_type=jnp.float32) + b_ref[...]
            xw_scr[...] = xw.astype(jnp.bfloat16).reshape(T, BB, H4)

            # ---- serial recurrence ------------------------------------------
            # t == 0 peeled: h0 = c0 = 0 -> no h @ W_hh matmul on the first step.
            h, c = gate_math(xw_scr[0].astype(jnp.float32),
                             jnp.zeros((BB, H), jnp.float32))
            if not is_last:
                h_scr[0] = h.astype(jnp.bfloat16)

            def step(t, carry):
                h, c = carry
                # W_hh read from its ref inside the body -> live range bounded
                # per iteration; gate math stays in f32 (safe on v5e too).
                # TODO(synk): keep W_hh resident in MXU weight regs across the
                # loop via pltpu.matmul_push_rhs / matmul_acc_lhs.
                gates = xw_scr[t].astype(jnp.float32) + jnp.dot(
                    h.astype(jnp.bfloat16), w_hh_ref[...],
                    preferred_element_type=jnp.float32)
                h, c = gate_math(gates, c)
                if not is_last:
                    h_scr[t] = h.astype(jnp.bfloat16)
                return h, c

            h, c = jax.lax.fori_loop(1, T, step, (h, c))

            if not is_last:
                # Next layer consumes the bf16 activations directly (no cast pass).
                # TODO(synk): wavefront-pipeline layer l+1 one timestep behind layer l
                # to overlap the two serial recurrences and drop h_scr entirely.
                layer_in = h_scr[...].reshape(T * BB, H)

        # ----- dropout(eval) = identity; FC + sigmoid on the final hidden state -----
        O = w_fc_ref.shape[0]
        if O == 1:
            # O == 1: lane reduction on the VPU/XLU; keep the MXU out of it.
            logits = jnp.sum(h * w_fc_ref[...], axis=-1, keepdims=True) + b_fc_ref[...]
        else:
            logits = jax.lax.dot_general(
                h, w_fc_ref[...], (((1,), (1,)), ((), ())),
                preferred_element_type=jnp.float32) + b_fc_ref[...]
        o_ref[...] = jax.nn.sigmoid(logits)

    return kernel


# ----------------------------------------------------------------------------
# Helpers
# ----------------------------------------------------------------------------
def _round_up(v, m):
    return ((v + m - 1) // m) * m


def _vmem_limit_bytes(T, BB, E, H, O, num_layers):
    """VMEM budget from actual buffer sizes (instead of a hard-coded constant)."""
    bf16, f32 = 2, 4
    scratch = T * BB * 4 * H * bf16
    if num_layers > 1:
        scratch += T * BB * H * bf16
    x_blk = T * BB * E * bf16
    weights = O * H * f32 + O * f32
    for layer in range(num_layers):
        d = E if layer == 0 else H
        weights += (d + H) * 4 * H * bf16 + 4 * H * f32
    out_blk = BB * O * f32
    # inputs/outputs double-buffered across grid steps; ~30% headroom for temporaries.
    total = scratch + 2 * (x_blk + weights + out_blk)
    # Clamp: >=32 MiB floor, <=128 MiB (v5e/v6e physical); computed figure keeps small
    # and medium configs well under v7x's 64 MiB.
    return int(min(max(total * 1.3 + (4 << 20), 32 << 20), 128 << 20))


def _replicated_spec(shape):
    ndim = len(shape)
    return pl.BlockSpec(tuple(shape), lambda i, _n=ndim: (0,) * _n)


# ----------------------------------------------------------------------------
# Wrapper
# ----------------------------------------------------------------------------
@jax.jit
def lstm_forward(token_ids, params):
    """Full forward pass matching the PyTorch module (eval mode)."""
    B, T = token_ids.shape
    num_layers = len(params["lstm_layers"])
    H = params["lstm_layers"][0]["w_hh_t"].shape[0]
    O = params["w_fc"].shape[0]
    E = params["embedding"].shape[1]

    # Embedding gather (glue): emit the time-major bf16 activation directly.
    # TODO(synk): fuse the gather into the kernel via PrefetchScalarGridSpec +
    # pl.Element row index_map to avoid the HBM round-trip for the activations.
    x = jnp.take(params["embedding"], token_ids.T, axis=0).astype(jnp.bfloat16)  # (T,B,E)

    # Pad batch to a sublane multiple.  For batches > 8, split into >=2 batch blocks
    # so the "parallel" grid axis can shard across the two v7x TensorCores; the block
    # stays <=256 rows (MXU M dim) and a multiple of 8 (unmasked vector ops).
    B_pad = _round_up(max(B, 8), 8)
    if B_pad <= 8:
        BB = B_pad
    else:
        BB = _round_up(min(max(8, B_pad // 2), 256), 8)
        B_pad = _round_up(B_pad, BB)
    if B_pad != B:
        x = jnp.pad(x, ((0, 0), (0, B_pad - B), (0, 0)))
    nb = B_pad // BB

    args = [x]
    in_specs = [pl.BlockSpec((T, BB, E), lambda i: (0, i, 0))]
    for layer in params["lstm_layers"]:
        for name in ("w_ih_t", "w_hh_t", "b"):
            args.append(layer[name])
            in_specs.append(_replicated_spec(layer[name].shape))
    args += [params["w_fc"], params["b_fc"]]
    in_specs += [_replicated_spec(params["w_fc"].shape),
                 _replicated_spec(params["b_fc"].shape)]

    scratch_shapes = [pltpu.VMEM((T, BB, 4 * H), jnp.bfloat16)]   # gate projections
    if num_layers > 1:
        scratch_shapes.append(pltpu.VMEM((T, BB, H), jnp.bfloat16))  # inter-layer acts

    out = pl.pallas_call(
        _make_fused_kernel(num_layers),
        out_shape=jax.ShapeDtypeStruct((B_pad, O), jnp.float32),
        grid_spec=pltpu.PrefetchScalarGridSpec(
            num_scalar_prefetch=0,
            grid=(nb,),
            in_specs=in_specs,
            out_specs=pl.BlockSpec((BB, O), lambda i: (i, 0)),
            scratch_shapes=scratch_shapes),
        compiler_params=pltpu.CompilerParams(
            dimension_semantics=("parallel",),
            vmem_limit_bytes=_vmem_limit_bytes(T, BB, E, H, O, num_layers)),
    )(*args)
    return out[:B]


# ----------------------------------------------------------------------------
# Deterministic parameter construction (synthetic, matching module shapes)
# ----------------------------------------------------------------------------
def make_params(key, vocab_size, embedding_dim, hidden_dim, num_layers, output_size):
    keys = jax.random.split(key, 2 + 4 * num_layers + 2)
    k_iter = iter(keys)

    bound = 1.0 / jnp.sqrt(hidden_dim)

    params = {
        "embedding": jax.random.normal(next(k_iter), (vocab_size, embedding_dim),
                                       jnp.float32) * 0.1,
        "lstm_layers": [],
    }

    for layer in range(num_layers):
        in_dim = embedding_dim if layer == 0 else hidden_dim
        w_ih = jax.random.uniform(next(k_iter), (4 * hidden_dim, in_dim),
                                  jnp.float32, -bound, bound)
        w_hh = jax.random.uniform(next(k_iter), (4 * hidden_dim, hidden_dim),
                                  jnp.float32, -bound, bound)
        b_ih = jax.random.uniform(next(k_iter), (4 * hidden_dim,),
                                  jnp.float32, -bound, bound)
        b_hh = jax.random.uniform(next(k_iter), (4 * hidden_dim,),
                                  jnp.float32, -bound, bound)
        params["lstm_layers"].append({
            "w_ih_t": w_ih.T.astype(jnp.bfloat16),       # (in_dim, 4H) bf16 (MXU)
            "w_hh_t": w_hh.T.astype(jnp.bfloat16),       # (H, 4H)      bf16 (MXU)
            "b": (b_ih + b_hh)[None, :],                 # (1, 4H)      f32
        })

    w_fc = jax.random.uniform(next(k_iter), (output_size, hidden_dim),
                              jnp.float32, -bound, bound)
    b_fc = jax.random.uniform(next(k_iter), (output_size,),
                              jnp.float32, -bound, bound)
    params["w_fc"] = w_fc                                # (O, H) f32
    params["b_fc"] = b_fc[None, :]                       # (1, O) f32
    return params


# ----------------------------------------------------------------------------
if __name__ == "__main__":
    # Small shapes consistent with the module's forward.  H is a multiple of 128 so
    # the per-gate lane slices in the kernel stay tile-aligned.
    VOCAB = 50
    EMBED = 64
    HIDDEN = 128
    LAYERS = 2
    OUT = 1
    BATCH = 2
    SEQ = 8

    key = jax.random.PRNGKey(0)
    k_params, k_ids = jax.random.split(key)

    params = make_params(k_params, VOCAB, EMBED, HIDDEN, LAYERS, OUT)
    token_ids = jax.random.randint(k_ids, (BATCH, SEQ), 0, VOCAB, dtype=jnp.int32)

    out = lstm_forward(token_ids, params)                # (BATCH, OUT), sigmoid probs
    jax.block_until_ready(out)

    assert out.shape == (BATCH, OUT)
    assert bool(jnp.all((out >= 0.0) & (out <= 1.0)))
    assert bool(jnp.all(jnp.isfinite(out)))
    print("KERNEL_OK")
</pallas_src>

<mosaic_0001>
module attributes {stable_mosaic.version = 11 : i64} {
  func.func @kernel(%arg0: i32, %arg1: memref<8x8x64xbf16, #tpu.memory_space<vmem>>, %arg2: memref<64x512xbf16, #tpu.memory_space<vmem>>, %arg3: memref<128x512xbf16, #tpu.memory_space<vmem>>, %arg4: memref<1x512xf32, #tpu.memory_space<vmem>>, %arg5: memref<128x512xbf16, #tpu.memory_space<vmem>>, %arg6: memref<128x512xbf16, #tpu.memory_space<vmem>>, %arg7: memref<1x512xf32, #tpu.memory_space<vmem>>, %arg8: memref<1x128xf32, #tpu.memory_space<vmem>>, %arg9: memref<1x1xf32, #tpu.memory_space<vmem>>, %arg10: memref<8x1xf32, #tpu.memory_space<vmem>>, %arg11: memref<8x8x512xbf16, #tpu.memory_space<vmem>>, %arg12: memref<8x8x128xbf16, #tpu.memory_space<vmem>>) attributes {dimension_semantics = [#tpu.dimension_semantics<parallel>], iteration_bounds = array<i64: 1>, scalar_prefetch = 0 : i64, scratch_operands = 2 : i64, tpu.core_type = #tpu.core_type<tc>, window_params = [{transform_indices = @transform_0, window_bounds = array<i64: 8, 8, 64>}, {pipeline_mode = #tpu.pipeline_mode<synchronous>, transform_indices = @transform_1, window_bounds = array<i64: 64, 512>}, {pipeline_mode = #tpu.pipeline_mode<synchronous>, transform_indices = @transform_2, window_bounds = array<i64: 128, 512>}, {pipeline_mode = #tpu.pipeline_mode<synchronous>, transform_indices = @transform_3, window_bounds = array<i64: 1, 512>}, {pipeline_mode = #tpu.pipeline_mode<synchronous>, transform_indices = @transform_4, window_bounds = array<i64: 128, 512>}, {pipeline_mode = #tpu.pipeline_mode<synchronous>, transform_indices = @transform_5, window_bounds = array<i64: 128, 512>}, {pipeline_mode = #tpu.pipeline_mode<synchronous>, transform_indices = @transform_6, window_bounds = array<i64: 1, 512>}, {pipeline_mode = #tpu.pipeline_mode<synchronous>, transform_indices = @transform_7, window_bounds = array<i64: 1, 128>}, {pipeline_mode = #tpu.pipeline_mode<synchronous>, transform_indices = @transform_8, window_bounds = array<i64: 1, 1>}, {transform_indices = @transform_9, window_bounds = array<i64: 8, 1>}]} {
    %c0 = arith.constant 0 : index
    %c0_0 = arith.constant 0 : index
    %c0_1 = arith.constant 0 : index
    %0 = vector.load %arg1[%c0, %c0_0, %c0_1] : memref<8x8x64xbf16, #tpu.memory_space<vmem>>, vector<8x8x64xbf16>
    %1 = vector.shape_cast %0 : vector<8x8x64xbf16> to vector<64x64xbf16>
    %c0_2 = arith.constant 0 : index
    %c0_3 = arith.constant 0 : index
    %2 = vector.load %arg2[%c0_2, %c0_3] : memref<64x512xbf16, #tpu.memory_space<vmem>>, vector<64x512xbf16>
    %cst = arith.constant dense<0.000000e+00> : vector<64x512xf32>
    %3 = tpu.matmul %1, %2, %cst {dimension_numbers = #tpu.dot_dimension_numbers<[1], [0], [0], [1], [0, 0, 1, 1], [], []>} : vector<64x64xbf16>, vector<64x512xbf16>, vector<64x512xf32> -> vector<64x512xf32>
    %c0_4 = arith.constant 0 : index
    %c0_5 = arith.constant 0 : index
    %4 = vector.load %arg4[%c0_4, %c0_5] : memref<1x512xf32, #tpu.memory_space<vmem>>, vector<1x512xf32>
    %5 = vector.broadcast %4 : vector<1x512xf32> to vector<64x512xf32>
    %6 = arith.addf %3, %5 : vector<64x512xf32>
    %7 = arith.truncf %6 : vector<64x512xf32> to vector<64x512xbf16>
    %8 = vector.shape_cast %7 : vector<64x512xbf16> to vector<8x8x512xbf16>
    %c0_6 = arith.constant 0 : index
    %c0_7 = arith.constant 0 : index
    %c0_8 = arith.constant 0 : index
    %9 = vector.load %arg11[%c0_6, %c0_7, %c0_8] : memref<8x8x512xbf16, #tpu.memory_space<vmem>>, vector<8x8x512xbf16>
    tpu.vector_store %arg11[%c0_6, %c0_7, %c0_8], %8 {strides = array<i32>} : memref<8x8x512xbf16, #tpu.memory_space<vmem>>, vector<8x8x512xbf16>,
    %c0_9 = arith.constant 0 : index
    %c0_10 = arith.constant 0 : index
    %c0_11 = arith.constant 0 : index
    %10 = vector.load %arg11[%c0_9, %c0_10, %c0_11] : memref<8x8x512xbf16, #tpu.memory_space<vmem>>, vector<1x8x512xbf16>
    %11 = vector.shape_cast %10 : vector<1x8x512xbf16> to vector<8x512xbf16>
    %12 = arith.extf %11 : vector<8x512xbf16> to vector<8x512xf32>
    %cst_12 = arith.constant 0.000000e+00 : f32
    %13 = vector.broadcast %cst_12 : f32 to vector<8x128xf32>
    %14 = vector.extract_strided_slice %12 {offsets = [0, 0], sizes = [8, 128], strides = [1, 1]} : vector<8x512xf32> to vector<8x128xf32>
    %15 = arith.negf %14 : vector<8x128xf32>
    %16 = math.exp %15 : vector<8x128xf32>
    %cst_13 = arith.constant 1.000000e+00 : f32
    %17 = vector.broadcast %cst_13 : f32 to vector<8x128xf32>
    %18 = arith.addf %17, %16 : vector<8x128xf32>
    %19 = arith.divf %17, %18 : vector<8x128xf32>
    %20 = vector.extract_strided_slice %12 {offsets = [0, 128], sizes = [8, 128], strides = [1, 1]} : vector<8x512xf32> to vector<8x128xf32>
    %21 = arith.negf %20 : vector<8x128xf32>
    %22 = math.exp %21 : vector<8x128xf32>
    %cst_14 = arith.constant 1.000000e+00 : f32
    %23 = vector.broadcast %cst_14 : f32 to vector<8x128xf32>
    %24 = arith.addf %23, %22 : vector<8x128xf32>
    %25 = arith.divf %23, %24 : vector<8x128xf32>
    %26 = vector.extract_strided_slice %12 {offsets = [0, 256], sizes = [8, 128], strides = [1, 1]} : vector<8x512xf32> to vector<8x128xf32>
    %27 = math.tanh %26 : vector<8x128xf32>
    %28 = vector.extract_strided_slice %12 {offsets = [0, 384], sizes = [8, 128], strides = [1, 1]} : vector<8x512xf32> to vector<8x128xf32>
    %29 = arith.negf %28 : vector<8x128xf32>
    %30 = math.exp %29 : vector<8x128xf32>
    %cst_15 = arith.constant 1.000000e+00 : f32
    %31 = vector.broadcast %cst_15 : f32 to vector<8x128xf32>
    %32 = arith.addf %31, %30 : vector<8x128xf32>
    %33 = arith.divf %31, %32 : vector<8x128xf32>
    %34 = arith.mulf %25, %13 : vector<8x128xf32>
    %35 = arith.mulf %19, %27 : vector<8x128xf32>
    %36 = arith.addf %34, %35 : vector<8x128xf32>
    %37 = math.tanh %36 : vector<8x128xf32>
    %38 = arith.mulf %33, %37 : vector<8x128xf32>
    %39 = arith.truncf %38 : vector<8x128xf32> to vector<8x128xbf16>
    %c0_16 = arith.constant 0 : index
    %c0_17 = arith.constant 0 : index
    %c0_18 = arith.constant 0 : index
    %40 = vector.load %arg12[%c0_16, %c0_17, %c0_18] : memref<8x8x128xbf16, #tpu.memory_space<vmem>>, vector<1x8x128xbf16>
    %41 = vector.shape_cast %40 : vector<1x8x128xbf16> to vector<8x128xbf16>
    %42 = vector.shape_cast %39 : vector<8x128xbf16> to vector<1x8x128xbf16>
    tpu.vector_store %arg12[%c0_16, %c0_17, %c0_18], %42 {strides = array<i32>} : memref<8x8x128xbf16, #tpu.memory_space<vmem>>, vector<1x8x128xbf16>,
    %c1_i32 = arith.constant 1 : i32
    %c7_i32 = arith.constant 7 : i32
    %43 = arith.addi %c1_i32, %c7_i32 : i32
    %c1_i32_19 = arith.constant 1 : i32
    %44:2 = scf.for %arg13 = %c1_i32 to %43 step %c1_i32_19 iter_args(%arg14 = %38, %arg15 = %36) -> (vector<8x128xf32>, vector<8x128xf32>)  : i32 {
      %100 = arith.index_cast %arg13 : i32 to index
      %c0_51 = arith.constant 0 : index
      %c0_52 = arith.constant 0 : index
      %101 = vector.load %arg11[%100, %c0_51, %c0_52] : memref<8x8x512xbf16, #tpu.memory_space<vmem>>, vector<1x8x512xbf16>
      %102 = vector.shape_cast %101 : vector<1x8x512xbf16> to vector<8x512xbf16>
      %103 = arith.extf %102 : vector<8x512xbf16> to vector<8x512xf32>
      %104 = arith.truncf %arg14 : vector<8x128xf32> to vector<8x128xbf16>
      %c0_53 = arith.constant 0 : index
      %c0_54 = arith.constant 0 : index
      %105 = vector.load %arg3[%c0_53, %c0_54] : memref<128x512xbf16, #tpu.memory_space<vmem>>, vector<128x512xbf16>
      %cst_55 = arith.constant dense<0.000000e+00> : vector<8x512xf32>
      %106 = tpu.matmul %104, %105, %cst_55 {dimension_numbers = #tpu.dot_dimension_numbers<[1], [0], [0], [1], [0, 0, 1, 1], [], []>} : vector<8x128xbf16>, vector<128x512xbf16>, vector<8x512xf32> -> vector<8x512xf32>
      %107 = arith.addf %103, %106 : vector<8x512xf32>
      %108 = vector.extract_strided_slice %107 {offsets = [0, 0], sizes = [8, 128], strides = [1, 1]} : vector<8x512xf32> to vector<8x128xf32>
      %109 = arith.negf %108 : vector<8x128xf32>
      %110 = math.exp %109 : vector<8x128xf32>
      %cst_56 = arith.constant 1.000000e+00 : f32
      %111 = vector.broadcast %cst_56 : f32 to vector<8x128xf32>
      %112 = arith.addf %111, %110 : vector<8x128xf32>
      %113 = arith.divf %111, %112 : vector<8x128xf32>
      %114 = vector.extract_strided_slice %107 {offsets = [0, 128], sizes = [8, 128], strides = [1, 1]} : vector<8x512xf32> to vector<8x128xf32>
      %115 = arith.negf %114 : vector<8x128xf32>
      %116 = math.exp %115 : vector<8x128xf32>
      %cst_57 = arith.constant 1.000000e+00 : f32
      %117 = vector.broadcast %cst_57 : f32 to vector<8x128xf32>
      %118 = arith.addf %117, %116 : vector<8x128xf32>
      %119 = arith.divf %117, %118 : vector<8x128xf32>
      %120 = vector.extract_strided_slice %107 {offsets = [0, 256], sizes = [8, 128], strides = [1, 1]} : vector<8x512xf32> to vector<8x128xf32>
      %121 = math.tanh %120 : vector<8x128xf32>
      %122 = vector.extract_strided_slice %107 {offsets = [0, 384], sizes = [8, 128], strides = [1, 1]} : vector<8x512xf32> to vector<8x128xf32>
      %123 = arith.negf %122 : vector<8x128xf32>
      %124 = math.exp %123 : vector<8x128xf32>
      %cst_58 = arith.constant 1.000000e+00 : f32
      %125 = vector.broadcast %cst_58 : f32 to vector<8x128xf32>
      %126 = arith.addf %125, %124 : vector<8x128xf32>
      %127 = arith.divf %125, %126 : vector<8x128xf32>
      %128 = arith.mulf %119, %arg15 : vector<8x128xf32>
      %129 = arith.mulf %113, %121 : vector<8x128xf32>
      %130 = arith.addf %128, %129 : vector<8x128xf32>
      %131 = math.tanh %130 : vector<8x128xf32>
      %132 = arith.mulf %127, %131 : vector<8x128xf32>
      %133 = arith.truncf %132 : vector<8x128xf32> to vector<8x128xbf16>
      %134 = arith.index_cast %arg13 : i32 to index
      %c0_59 = arith.constant 0 : index
      %c0_60 = arith.constant 0 : index
      %135 = vector.load %arg12[%134, %c0_59, %c0_60] : memref<8x8x128xbf16, #tpu.memory_space<vmem>>, vector<1x8x128xbf16>
      %136 = vector.shape_cast %135 : vector<1x8x128xbf16> to vector<8x128xbf16>
      %137 = vector.shape_cast %133 : vector<8x128xbf16> to vector<1x8x128xbf16>
      tpu.vector_store %arg12[%134, %c0_59, %c0_60], %137 {strides = array<i32>} : memref<8x8x128xbf16, #tpu.memory_space<vmem>>, vector<1x8x128xbf16>,
      scf.yield %132, %130 : vector<8x128xf32>, vector<8x128xf32>
    }
    %c7_i32_20 = arith.constant 7 : i32
    %c0_21 = arith.constant 0 : index
    %c0_22 = arith.constant 0 : index
    %c0_23 = arith.constant 0 : index
    %45 = vector.load %arg12[%c0_21, %c0_22, %c0_23] : memref<8x8x128xbf16, #tpu.memory_space<vmem>>, vector<8x8x128xbf16>
    %46 = vector.shape_cast %45 : vector<8x8x128xbf16> to vector<64x128xbf16>
    %c0_24 = arith.constant 0 : index
    %c0_25 = arith.constant 0 : index
    %47 = vector.load %arg5[%c0_24, %c0_25] : memref<128x512xbf16, #tpu.memory_space<vmem>>, vector<128x512xbf16>
    %cst_26 = arith.constant dense<0.000000e+00> : vector<64x512xf32>
    %48 = tpu.matmul %46, %47, %cst_26 {dimension_numbers = #tpu.dot_dimension_numbers<[1], [0], [0], [1], [0, 0, 1, 1], [], []>} : vector<64x128xbf16>, vector<128x512xbf16>, vector<64x512xf32> -> vector<64x512xf32>
    %c0_27 = arith.constant 0 : index
    %c0_28 = arith.constant 0 : index
    %49 = vector.load %arg7[%c0_27, %c0_28] : memref<1x512xf32, #tpu.memory_space<vmem>>, vector<1x512xf32>
    %50 = vector.broadcast %49 : vector<1x512xf32> to vector<64x512xf32>
    %51 = arith.addf %48, %50 : vector<64x512xf32>
    %52 = arith.truncf %51 : vector<64x512xf32> to vector<64x512xbf16>
    %53 = vector.shape_cast %52 : vector<64x512xbf16> to vector<8x8x512xbf16>
    %c0_29 = arith.constant 0 : index
    %c0_30 = arith.constant 0 : index
    %c0_31 = arith.constant 0 : index
    %54 = vector.load %arg11[%c0_29, %c0_30, %c0_31] : memref<8x8x512xbf16, #tpu.memory_space<vmem>>, vector<8x8x512xbf16>
    tpu.vector_store %arg11[%c0_29, %c0_30, %c0_31], %53 {strides = array<i32>} : memref<8x8x512xbf16, #tpu.memory_space<vmem>>, vector<8x8x512xbf16>,
    %c0_32 = arith.constant 0 : index
    %c0_33 = arith.constant 0 : index
    %c0_34 = arith.constant 0 : index
    %55 = vector.load %arg11[%c0_32, %c0_33, %c0_34] : memref<8x8x512xbf16, #tpu.memory_space<vmem>>, vector<1x8x512xbf16>
    %56 = vector.shape_cast %55 : vector<1x8x512xbf16> to vector<8x512xbf16>
    %57 = arith.extf %56 : vector<8x512xbf16> to vector<8x512xf32>
    %cst_35 = arith.constant 0.000000e+00 : f32
    %58 = vector.broadcast %cst_35 : f32 to vector<8x128xf32>
    %59 = vector.extract_strided_slice %57 {offsets = [0, 0], sizes = [8, 128], strides = [1, 1]} : vector<8x512xf32> to vector<8x128xf32>
    %60 = arith.negf %59 : vector<8x128xf32>
    %61 = math.exp %60 : vector<8x128xf32>
    %cst_36 = arith.constant 1.000000e+00 : f32
    %62 = vector.broadcast %cst_36 : f32 to vector<8x128xf32>
    %63 = arith.addf %62, %61 : vector<8x128xf32>
    %64 = arith.divf %62, %63 : vector<8x128xf32>
    %65 = vector.extract_strided_slice %57 {offsets = [0, 128], sizes = [8, 128], strides = [1, 1]} : vector<8x512xf32> to vector<8x128xf32>
    %66 = arith.negf %65 : vector<8x128xf32>
    %67 = math.exp %66 : vector<8x128xf32>
    %cst_37 = arith.constant 1.000000e+00 : f32
    %68 = vector.broadcast %cst_37 : f32 to vector<8x128xf32>
    %69 = arith.addf %68, %67 : vector<8x128xf32>
    %70 = arith.divf %68, %69 : vector<8x128xf32>
    %71 = vector.extract_strided_slice %57 {offsets = [0, 256], sizes = [8, 128], strides = [1, 1]} : vector<8x512xf32> to vector<8x128xf32>
    %72 = math.tanh %71 : vector<8x128xf32>
    %73 = vector.extract_strided_slice %57 {offsets = [0, 384], sizes = [8, 128], strides = [1, 1]} : vector<8x512xf32> to vector<8x128xf32>
    %74 = arith.negf %73 : vector<8x128xf32>
    %75 = math.exp %74 : vector<8x128xf32>
    %cst_38 = arith.constant 1.000000e+00 : f32
    %76 = vector.broadcast %cst_38 : f32 to vector<8x128xf32>
    %77 = arith.addf %76, %75 : vector<8x128xf32>
    %78 = arith.divf %76, %77 : vector<8x128xf32>
    %79 = arith.mulf %70, %58 : vector<8x128xf32>
    %80 = arith.mulf %64, %72 : vector<8x128xf32>
    %81 = arith.addf %79, %80 : vector<8x128xf32>
    %82 = math.tanh %81 : vector<8x128xf32>
    %83 = arith.mulf %78, %82 : vector<8x128xf32>
    %c1_i32_39 = arith.constant 1 : i32
    %c7_i32_40 = arith.constant 7 : i32
    %84 = arith.addi %c1_i32_39, %c7_i32_40 : i32
    %c1_i32_41 = arith.constant 1 : i32
    %85:2 = scf.for %arg13 = %c1_i32_39 to %84 step %c1_i32_41 iter_args(%arg14 = %83, %arg15 = %81) -> (vector<8x128xf32>, vector<8x128xf32>)  : i32 {
      %100 = arith.index_cast %arg13 : i32 to index
      %c0_51 = arith.constant 0 : index
      %c0_52 = arith.constant 0 : index
      %101 = vector.load %arg11[%100, %c0_51, %c0_52] : memref<8x8x512xbf16, #tpu.memory_space<vmem>>, vector<1x8x512xbf16>
      %102 = vector.shape_cast %101 : vector<1x8x512xbf16> to vector<8x512xbf16>
      %103 = arith.extf %102 : vector<8x512xbf16> to vector<8x512xf32>
      %104 = arith.truncf %arg14 : vector<8x128xf32> to vector<8x128xbf16>
      %c0_53 = arith.constant 0 : index
      %c0_54 = arith.constant 0 : index
      %105 = vector.load %arg6[%c0_53, %c0_54] : memref<128x512xbf16, #tpu.memory_space<vmem>>, vector<128x512xbf16>
      %cst_55 = arith.constant dense<0.000000e+00> : vector<8x512xf32>
      %106 = tpu.matmul %104, %105, %cst_55 {dimension_numbers = #tpu.dot_dimension_numbers<[1], [0], [0], [1], [0, 0, 1, 1], [], []>} : vector<8x128xbf16>, vector<128x512xbf16>, vector<8x512xf32> -> vector<8x512xf32>
      %107 = arith.addf %103, %106 : vector<8x512xf32>
      %108 = vector.extract_strided_slice %107 {offsets = [0, 0], sizes = [8, 128], strides = [1, 1]} : vector<8x512xf32> to vector<8x128xf32>
      %109 = arith.negf %108 : vector<8x128xf32>
      %110 = math.exp %109 : vector<8x128xf32>
      %cst_56 = arith.constant 1.000000e+00 : f32
      %111 = vector.broadcast %cst_56 : f32 to vector<8x128xf32>
      %112 = arith.addf %111, %110 : vector<8x128xf32>
      %113 = arith.divf %111, %112 : vector<8x128xf32>
      %114 = vector.extract_strided_slice %107 {offsets = [0, 128], sizes = [8, 128], strides = [1, 1]} : vector<8x512xf32> to vector<8x128xf32>
      %115 = arith.negf %114 : vector<8x128xf32>
      %116 = math.exp %115 : vector<8x128xf32>
      %cst_57 = arith.constant 1.000000e+00 : f32
      %117 = vector.broadcast %cst_57 : f32 to vector<8x128xf32>
      %118 = arith.addf %117, %116 : vector<8x128xf32>
      %119 = arith.divf %117, %118 : vector<8x128xf32>
      %120 = vector.extract_strided_slice %107 {offsets = [0, 256], sizes = [8, 128], strides = [1, 1]} : vector<8x512xf32> to vector<8x128xf32>
      %121 = math.tanh %120 : vector<8x128xf32>
      %122 = vector.extract_strided_slice %107 {offsets = [0, 384], sizes = [8, 128], strides = [1, 1]} : vector<8x512xf32> to vector<8x128xf32>
      %123 = arith.negf %122 : vector<8x128xf32>
      %124 = math.exp %123 : vector<8x128xf32>
      %cst_58 = arith.constant 1.000000e+00 : f32
      %125 = vector.broadcast %cst_58 : f32 to vector<8x128xf32>
      %126 = arith.addf %125, %124 : vector<8x128xf32>
      %127 = arith.divf %125, %126 : vector<8x128xf32>
      %128 = arith.mulf %119, %arg15 : vector<8x128xf32>
      %129 = arith.mulf %113, %121 : vector<8x128xf32>
      %130 = arith.addf %128, %129 : vector<8x128xf32>
      %131 = math.tanh %130 : vector<8x128xf32>
      %132 = arith.mulf %127, %131 : vector<8x128xf32>
      scf.yield %132, %130 : vector<8x128xf32>, vector<8x128xf32>
    }
    %c7_i32_42 = arith.constant 7 : i32
    %c0_43 = arith.constant 0 : index
    %c0_44 = arith.constant 0 : index
    %86 = vector.load %arg8[%c0_43, %c0_44] : memref<1x128xf32, #tpu.memory_space<vmem>>, vector<1x128xf32>
    %87 = vector.broadcast %86 : vector<1x128xf32> to vector<8x128xf32>
    %88 = arith.mulf %85#0, %87 : vector<8x128xf32>
    %cst_45 = arith.constant dense<0.000000e+00> : vector<8xf32>
    %89 = vector.multi_reduction <add>, %88, %cst_45 [1] : vector<8x128xf32> to vector<8xf32>
    %90 = vector.shape_cast %89 : vector<8xf32> to vector<8x1xf32>
    %c0_46 = arith.constant 0 : index
    %c0_47 = arith.constant 0 : index
    %91 = vector.load %arg9[%c0_46, %c0_47] : memref<1x1xf32, #tpu.memory_space<vmem>>, vector<1x1xf32>
    %92 = vector.broadcast %91 : vector<1x1xf32> to vector<8x1xf32>
    %93 = arith.addf %90, %92 : vector<8x1xf32>
    %94 = arith.negf %93 : vector<8x1xf32>
    %95 = math.exp %94 : vector<8x1xf32>
    %cst_48 = arith.constant 1.000000e+00 : f32
    %96 = vector.broadcast %cst_48 : f32 to vector<8x1xf32>
    %97 = arith.addf %96, %95 : vector<8x1xf32>
    %98 = arith.divf %96, %97 : vector<8x1xf32>
    %c0_49 = arith.constant 0 : index
    %c0_50 = arith.constant 0 : index
    %99 = vector.load %arg10[%c0_49, %c0_50] : memref<8x1xf32, #tpu.memory_space<vmem>>, vector<8x1xf32>
    tpu.vector_store %arg10[%c0_49, %c0_50], %98 {strides = array<i32>} : memref<8x1xf32, #tpu.memory_space<vmem>>, vector<8x1xf32>,
    return
  }
  func.func @transform_0(%arg0: i32) -> (i32, i32, i32) {
    %c0_i32 = arith.constant 0 : i32
    %c0_i32_0 = arith.constant 0 : i32
    %c0_i32_1 = arith.constant 0 : i32
    return %c0_i32, %arg0, %c0_i32_0 : i32, i32, i32
  }
  func.func @transform_1(%arg0: i32) -> (i32, i32) {
    %c0_i32 = arith.constant 0 : i32
    %c0_i32_0 = arith.constant 0 : i32
    %c0_i32_1 = arith.constant 0 : i32
    return %c0_i32, %c0_i32_0 : i32, i32
  }
  func.func @transform_2(%arg0: i32) -> (i32, i32) {
    %c0_i32 = arith.constant 0 : i32
    %c0_i32_0 = arith.constant 0 : i32
    %c0_i32_1 = arith.constant 0 : i32
    return %c0_i32, %c0_i32_0 : i32, i32
  }
  func.func @transform_3(%arg0: i32) -> (i32, i32) {
    %c0_i32 = arith.constant 0 : i32
    %c0_i32_0 = arith.constant 0 : i32
    %c0_i32_1 = arith.constant 0 : i32
    return %c0_i32, %c0_i32_0 : i32, i32
  }
  func.func @transform_4(%arg0: i32) -> (i32, i32) {
    %c0_i32 = arith.constant 0 : i32
    %c0_i32_0 = arith.constant 0 : i32
    %c0_i32_1 = arith.constant 0 : i32
    return %c0_i32, %c0_i32_0 : i32, i32
  }
  func.func @transform_5(%arg0: i32) -> (i32, i32) {
    %c0_i32 = arith.constant 0 : i32
    %c0_i32_0 = arith.constant 0 : i32
    %c0_i32_1 = arith.constant 0 : i32
    return %c0_i32, %c0_i32_0 : i32, i32
  }
  func.func @transform_6(%arg0: i32) -> (i32, i32) {
    %c0_i32 = arith.constant 0 : i32
    %c0_i32_0 = arith.constant 0 : i32
    %c0_i32_1 = arith.constant 0 : i32
    return %c0_i32, %c0_i32_0 : i32, i32
  }
  func.func @transform_7(%arg0: i32) -> (i32, i32) {
    %c0_i32 = arith.constant 0 : i32
    %c0_i32_0 = arith.constant 0 : i32
    %c0_i32_1 = arith.constant 0 : i32
    return %c0_i32, %c0_i32_0 : i32, i32
  }
  func.func @transform_8(%arg0: i32) -> (i32, i32) {
    %c0_i32 = arith.constant 0 : i32
    %c0_i32_0 = arith.constant 0 : i32
    %c0_i32_1 = arith.constant 0 : i32
    return %c0_i32, %c0_i32_0 : i32, i32
  }
  func.func @transform_9(%arg0: i32) -> (i32, i32) {
    %c0_i32 = arith.constant 0 : i32
    %c0_i32_0 = arith.constant 0 : i32
    return %arg0, %c0_i32 : i32, i32
  }
}

</mosaic_0001>

<llo_original>
// kernel: lstm_forward.1
$region0: #{lstm_forward.1}
  #allocation0 [shape = 'u32[]', space=smem, size = 0x4, offset = 0x4, fixed_abs, tag = 'smem constant byte address 0x4 - core index']
  #allocation1 [shape = 'u32[72,128]{1,0:T(1,128)}', space=vmem, size = 0x9000, scoped, tag = 'internal scratch']
  #allocation2 [shape = 'bf16[8,8,512]{2,1,0:T(8,128)(2,1)}', space=vmem, size = 0x10000, scoped, tag = 'scratch operand']
  #allocation3 [shape = 'bf16[8,8,128]{2,1,0:T(8,128)(2,1)}', space=vmem, size = 0x4000, scoped, tag = 'scratch operand']
  #allocation4 [shape = 'f32[1,1]{1,0:T(1,128)S(1)}', space=vmem, size = 0x200, scoped, tag = 'scoped memory for lstm_forward.1']
  %s0 = inlined_call_operand.vmem [shape: bf16[8,8,64], index: 0, kind: input, shape index: {}]
  %s1 = inlined_call_operand.vmem [shape: bf16[64,512], index: 1, kind: input, shape index: {}]
  %s2 = inlined_call_operand.hbm [shape: bf16[128,512], index: 2, kind: input, shape index: {}]
  %s3 = inlined_call_operand.vmem [shape: f32[1,512], index: 3, kind: input, shape index: {}]
  %s4 = inlined_call_operand.hbm [shape: bf16[128,512], index: 4, kind: input, shape index: {}]
  %s5 = inlined_call_operand.hbm [shape: bf16[128,512], index: 5, kind: input, shape index: {}]
  %s6 = inlined_call_operand.vmem [shape: f32[1,512], index: 6, kind: input, shape index: {}]
  %s7 = inlined_call_operand.vmem [shape: f32[1,128], index: 7, kind: input, shape index: {}]
  %s8 = inlined_call_operand.<no memory space> [shape: f32[1,1], index: 8, kind: input, shape index: {}]
  %s9 = inlined_call_operand.vmem [shape: f32[8,1], index: 9, kind: output, shape index: {}]
  %s10 = sld [smem:[#allocation0]]
  $region72: #{lstm_forward.1} parent=0
    _
  %s12 = ssub.s32 1, %s10
  %s13 = scalar_select 0, %s12, %s10
  %v14 = vstv %s8
  %15 = vst [vmem:[#allocation4] sm:$0x1] %v14
  $region1: #{lstm_forward.1} parent=0
    #allocation5 [shape = 'u8[131072]{0}', space=vmem, size = 0x20000, scoped, tag = 'input window, operand 2, single buffered']
    #allocation6 [shape = 's32[1]{0}', space=sflag, size = 0x4, scoped, tag = 'scoped memory for lstm_forward.1']
    #allocation7 [shape = 'u8[131072]{0}', space=vmem, size = 0x20000, scoped, tag = 'input window, operand 4, single buffered']
    #allocation8 [shape = 's32[1]{0}', space=sflag, size = 0x4, scoped, tag = 'scoped memory for lstm_forward.1']
    #allocation9 [shape = 'u8[131072]{0}', space=vmem, size = 0x20000, scoped, tag = 'input window, operand 5, single buffered']
    %16 = vsyncpa [#allocation6], 0
    %17 = vsyncpa [#allocation8], 0
    // Predicated region
    $region2: #{lstm_forward.1} parent=1 // pred_check
      _
    $region3: #{lstm_forward.1} parent=1 // pred_check_branch
      %19 = sbr.rel (0) target = $region5
    $region4: #{lstm_forward.1} parent=1 // pred_region
      _
    $region5: #{lstm_forward.1} parent=1 // pred_fallthru
      _
    // Predicated region
    $region6: #{lstm_forward.1} parent=1 // pred_check
      _
    $region7: #{lstm_forward.1} parent=1 // pred_check_branch
      %21 = sbr.rel (0) target = $region9
    $region8: #{lstm_forward.1} parent=1 // pred_region
      _
    $region9: #{lstm_forward.1} parent=1 // pred_fallthru
      _
    // Predicated region
    $region10: #{lstm_forward.1} parent=1 // pred_check
      _
    $region11: #{lstm_forward.1} parent=1 // pred_check_branch
      %23 = sbr.rel (0) target = $region13
    $region12: #{lstm_forward.1} parent=1 // pred_region
      %25 = vsyncadd [#allocation6], 0
      %s26 = sshll.u32 %s2, 4
      %s27 = int_to_ptr.hbm [resolvable:$true] %s26
      %s28 = sshll.u32 [#allocation5], 4
      %s29 = int_to_ptr.vmem [resolvable:$true] %s28
      %34 = dma.hbm_to_vmem [thread:$0]  %s27, 4096, %s29, [#allocation6], 256, 256, 16
    $region13: #{lstm_forward.1} parent=1 // pred_fallthru
      _
    // Predicated region
    $region14: #{lstm_forward.1} parent=1 // pred_check
      _
    $region15: #{lstm_forward.1} parent=1 // pred_check_branch
      %36 = sbr.rel (0) target = $region17
    $region16: #{lstm_forward.1} parent=1 // pred_region
      _
    $region17: #{lstm_forward.1} parent=1 // pred_fallthru
      _
    // Predicated region
    $region18: #{lstm_forward.1} parent=1 // pred_check
      _
    $region19: #{lstm_forward.1} parent=1 // pred_check_branch
      %38 = sbr.rel (0) target = $region21
    $region20: #{lstm_forward.1} parent=1 // pred_region
      %40 = vsyncadd [#allocation8], 0
      %s41 = sshll.u32 %s4, 4
      %s42 = int_to_ptr.hbm [resolvable:$true] %s41
      %s43 = sshll.u32 [#allocation7], 4
      %s44 = int_to_ptr.vmem [resolvable:$true] %s43
      %49 = dma.hbm_to_vmem [thread:$0]  %s42, 4096, %s44, [#allocation8], 256, 256, 16
    $region21: #{lstm_forward.1} parent=1 // pred_fallthru
      _
    // Predicated region
    $region22: #{lstm_forward.1} parent=1 // pred_check
      _
    $region23: #{lstm_forward.1} parent=1 // pred_check_branch
      %51 = sbr.rel (0) target = $region25
    $region24: #{lstm_forward.1} parent=1 // pred_region
      %53 = vsyncadd [#allocation8], 0
      %s54 = sshll.u32 %s5, 4
      %s55 = int_to_ptr.hbm [resolvable:$true] %s54
      %s56 = sshll.u32 [#allocation9], 4
      %s57 = int_to_ptr.vmem [resolvable:$true] %s56
      %62 = dma.hbm_to_vmem [thread:$0]  %s55, 4096, %s57, [#allocation8], 256, 256, 16
    $region25: #{lstm_forward.1} parent=1 // pred_fallthru
      _
    // Predicated region
    $region26: #{lstm_forward.1} parent=1 // pred_check
      _
    $region27: #{lstm_forward.1} parent=1 // pred_check_branch
      %64 = sbr.rel (0) target = $region29
    $region28: #{lstm_forward.1} parent=1 // pred_region
      _
    $region29: #{lstm_forward.1} parent=1 // pred_fallthru
      _
    // Predicated region
    $region30: #{lstm_forward.1} parent=1 // pred_check
      _
    $region31: #{lstm_forward.1} parent=1 // pred_check_branch
      %66 = sbr.rel (0) target = $region33
    $region32: #{lstm_forward.1} parent=1 // pred_region
      _
    $region33: #{lstm_forward.1} parent=1 // pred_fallthru
      _
    // Predicated region
    $region34: #{lstm_forward.1} parent=1 // pred_check
      _
    $region35: #{lstm_forward.1} parent=1 // pred_check_branch
      %68 = sbr.rel (0) target = $region37
    $region36: #{lstm_forward.1} parent=1 // pred_region
      _
    $region37: #{lstm_forward.1} parent=1 // pred_fallthru
      _
    // Predicated region
    $region38: #{lstm_forward.1} parent=1 // pred_check
      _
    $region39: #{lstm_forward.1} parent=1 // pred_check_branch
      %70 = sbr.rel (0) target = $region41
    $region40: #{lstm_forward.1} parent=1 // pred_region
      %72 = dma.done [#allocation6], 4096
    $region41: #{lstm_forward.1} parent=1 // pred_fallthru
      _
    // Predicated region
    $region42: #{lstm_forward.1} parent=1 // pred_check
      _
    $region43: #{lstm_forward.1} parent=1 // pred_check_branch
      %74 = sbr.rel (0) target = $region45
    $region44: #{lstm_forward.1} parent=1 // pred_region
      %76 = dma.done [#allocation8], 4096
    $region45: #{lstm_forward.1} parent=1 // pred_fallthru
      _
    // Predicated region
    $region46: #{lstm_forward.1} parent=1 // pred_check
      _
    $region47: #{lstm_forward.1} parent=1 // pred_check_branch
      %78 = sbr.rel (0) target = $region49
    $region48: #{lstm_forward.1} parent=1 // pred_region
      %80 = dma.done [#allocation8], 4096
    $region49: #{lstm_forward.1} parent=1 // pred_fallthru
      _
    %v82 = vld [vmem:[%s0] sm:$0xf]
    %v83 = vld [vmem:[%s0 + $0x4] sm:$0xf]
    %v84 = vld [vmem:[%s0 + $0x8] sm:$0xf]
    %v85 = vld [vmem:[%s0 + $0xc] sm:$0xf]
    %v86 = vld [vmem:[%s0 + $0x10] sm:$0xf]
    %v87 = vld [vmem:[%s0 + $0x14] sm:$0xf]
    %v88 = vld [vmem:[%s0 + $0x18] sm:$0xf]
    %v89 = vld [vmem:[%s0 + $0x1c] sm:$0xf]
    %v90 = vld [vmem:[%s1] sm:$0xff]
    %v91 = vld [vmem:[%s1 + $0x8] sm:$0xff]
    %v92 = vld [vmem:[%s1 + $0x10] sm:$0xff]
    %v93 = vld [vmem:[%s1 + $0x18] sm:$0xff]
    %v94 = vld [vmem:[%s1 + $0x20] sm:$0xff]
    %v95 = vld [vmem:[%s1 + $0x28] sm:$0xff]
    %v96 = vld [vmem:[%s1 + $0x30] sm:$0xff]
    %v97 = vld [vmem:[%s1 + $0x38] sm:$0xff]
    %v98 = vld [vmem:[%s1 + $0x40] sm:$0xff]
    %v99 = vld [vmem:[%s1 + $0x48] sm:$0xff]
    %v100 = vld [vmem:[%s1 + $0x50] sm:$0xff]
    %v101 = vld [vmem:[%s1 + $0x58] sm:$0xff]
    %v102 = vld [vmem:[%s1 + $0x60] sm:$0xff]
    %v103 = vld [vmem:[%s1 + $0x68] sm:$0xff]
    %v104 = vld [vmem:[%s1 + $0x70] sm:$0xff]
    %v105 = vld [vmem:[%s1 + $0x78] sm:$0xff]
    %v106 = vld [vmem:[%s3] sm:$0xf]
    %v108 = vperm.slane %v106, 0
    %v109 = vperm.slane %v106, 1
    %v110 = vperm.slane %v106, 2
    %v111 = vperm.slane %v106, 3
    %v124 = vunpack.c.l.b16 %v82
    %v125 = vunpack.c.l.b16 %v83
    %v126 = vunpack.c.l.b16 %v84
    %v127 = vunpack.c.l.b16 %v85
    %v128 = vunpack.c.l.b16 %v86
    %v129 = vunpack.c.l.b16 %v87
    %v130 = vunpack.c.l.b16 %v88
    %v131 = vunpack.c.l.b16 %v89
    %v132 = vpack.c.b16 %v125, %v124
    %v133 = vpack.c.b16 %v127, %v126
    %v134 = vpack.c.b16 %v129, %v128
    %v135 = vpack.c.b16 %v131, %v130
    %v152 = vunpack.c.l.b16 %v90
    %v153 = vunpack.c.h.b16 %v90
    %v154 = vunpack.c.l.b16 %v91
    %v155 = vunpack.c.h.b16 %v91
    %v156 = vunpack.c.l.b16 %v92
    %v157 = vunpack.c.h.b16 %v92
    %v158 = vunpack.c.l.b16 %v93
    %v159 = vunpack.c.h.b16 %v93
    %v160 = vunpack.c.l.b16 %v94
    %v161 = vunpack.c.h.b16 %v94
    %v162 = vunpack.c.l.b16 %v95
    %v163 = vunpack.c.h.b16 %v95
    %v164 = vunpack.c.l.b16 %v96
    %v165 = vunpack.c.h.b16 %v96
    %v166 = vunpack.c.l.b16 %v97
    %v167 = vunpack.c.h.b16 %v97
    %v168 = vunpack.c.l.b16 %v98
    %v169 = vunpack.c.h.b16 %v98
    %v170 = vunpack.c.l.b16 %v99
    %v171 = vunpack.c.h.b16 %v99
    %v172 = vunpack.c.l.b16 %v100
    %v173 = vunpack.c.h.b16 %v100
    %v174 = vunpack.c.l.b16 %v101
    %v175 = vunpack.c.h.b16 %v101
    %v176 = vunpack.c.l.b16 %v102
    %v177 = vunpack.c.h.b16 %v102
    %v178 = vunpack.c.l.b16 %v103
    %v179 = vunpack.c.h.b16 %v103
    %v180 = vunpack.c.l.b16 %v104
    %v181 = vunpack.c.h.b16 %v104
    %v182 = vunpack.c.l.b16 %v105
    %v183 = vunpack.c.h.b16 %v105
    %v184 = vpack.c.b16 %v156, %v152
    %v185 = vpack.c.b16 %v157, %v153
    %v186 = vpack.c.b16 %v158, %v154
    %v187 = vpack.c.b16 %v159, %v155
    %v188 = vpack.c.b16 %v164, %v160
    %v189 = vpack.c.b16 %v165, %v161
    %v190 = vpack.c.b16 %v166, %v162
    %v191 = vpack.c.b16 %v167, %v163
    %v192 = vpack.c.b16 %v172, %v168
    %v193 = vpack.c.b16 %v173, %v169
    %v194 = vpack.c.b16 %v174, %v170
    %v195 = vpack.c.b16 %v175, %v171
    %v196 = vpack.c.b16 %v180, %v176
    %v197 = vpack.c.b16 %v181, %v177
    %v198 = vpack.c.b16 %v182, %v178
    %v199 = vpack.c.b16 %v183, %v179
    %vm216 = vcmask 523264
    %v218 = vsel %vm216, %v132, 0
    %v221 = vsel %vm216, %v133, 0
    %v224 = vsel %vm216, %v134, 0
    %v227 = vsel %vm216, %v135, 0
    %229 = vmatpush.bf16.msra.mxu0 0
    %230 = vmatpush.bf16.msra.mxu0 0
    %231 = vmatpush.bf16.msra.mxu0 0
    %232 = vmatpush.bf16.msra.mxu0 0
    %233 = vmatpush.bf16.msra.mxu0 %v196
    %234 = vmatpush.bf16.msra.mxu0 %v192
    %235 = vmatpush.bf16.msra.mxu0 %v188
    %236 = vmatpush.bf16.msra.mxu0 %v184
    %237 = vmatmul.bf16.gmra.mxu0 %v218
    %v238 = vpop.f32.mrf.mxu0
    %v239 = vadd.f32 %v108, %v238
    %v240 = vpop.f32.mrf.mxu0
    %v241 = vadd.f32 %v108, %v240
    %242 = vmatmul.bf16.gmra.mxu0 %v221
    %v243 = vpop.f32.mrf.mxu0
    %v244 = vadd.f32 %v108, %v243
    %v245 = vpop.f32.mrf.mxu0
    %v246 = vadd.f32 %v108, %v245
    %247 = vmatmul.bf16.gmra.mxu0 %v224
    %v248 = vpop.f32.mrf.mxu0
    %v249 = vadd.f32 %v108, %v248
    %v250 = vpop.f32.mrf.mxu0
    %v251 = vadd.f32 %v108, %v250
    %252 = vmatmul.bf16.gmra.mxu0 %v227
    %v253 = vpop.f32.mrf.mxu0
    %v254 = vadd.f32 %v108, %v253
    %v255 = vpop.f32.mrf.mxu0
    %v256 = vadd.f32 %v108, %v255
    %257 = vdwg.mxu0
    %258 = vmatpush.bf16.msra.mxu0 0
    %259 = vmatpush.bf16.msra.mxu0 0
    %260 = vmatpush.bf16.msra.mxu0 0
    %261 = vmatpush.bf16.msra.mxu0 0
    %262 = vmatpush.bf16.msra.mxu0 %v197
    %263 = vmatpush.bf16.msra.mxu0 %v193
    %264 = vmatpush.bf16.msra.mxu0 %v189
    %265 = vmatpush.bf16.msra.mxu0 %v185
    %266 = vmatmul.bf16.gmra.mxu0 %v218
    %v267 = vpop.f32.mrf.mxu0
    %v268 = vadd.f32 %v109, %v267
    %v269 = vpop.f32.mrf.mxu0
    %v270 = vadd.f32 %v109, %v269
    %271 = vmatmul.bf16.gmra.mxu0 %v221
    %v272 = vpop.f32.mrf.mxu0
    %v273 = vadd.f32 %v109, %v272
    %v274 = vpop.f32.mrf.mxu0
    %v275 = vadd.f32 %v109, %v274
    %276 = vmatmul.bf16.gmra.mxu0 %v224
    %v277 = vpop.f32.mrf.mxu0
    %v278 = vadd.f32 %v109, %v277
    %v279 = vpop.f32.mrf.mxu0
    %v280 = vadd.f32 %v109, %v279
    %281 = vmatmul.bf16.gmra.mxu0 %v227
    %v282 = vpop.f32.mrf.mxu0
    %v283 = vadd.f32 %v109, %v282
    %v284 = vpop.f32.mrf.mxu0
    %v285 = vadd.f32 %v109, %v284
    %286 = vdwg.mxu0
    %287 = vmatpush.bf16.msra.mxu0 0
    %288 = vmatpush.bf16.msra.mxu0 0
    %289 = vmatpush.bf16.msra.mxu0 0
    %290 = vmatpush.bf16.msra.mxu0 0
    %291 = vmatpush.bf16.msra.mxu0 %v198
    %292 = vmatpush.bf16.msra.mxu0 %v194
    %293 = vmatpush.bf16.msra.mxu0 %v190
    %294 = vmatpush.bf16.msra.mxu0 %v186
    %295 = vmatmul.bf16.gmra.mxu0 %v218
    %v296 = vpop.f32.mrf.mxu0
    %v297 = vadd.f32 %v110, %v296
    %v298 = vpop.f32.mrf.mxu0
    %v299 = vadd.f32 %v110, %v298
    %300 = vmatmul.bf16.gmra.mxu0 %v221
    %v301 = vpop.f32.mrf.mxu0
    %v302 = vadd.f32 %v110, %v301
    %v303 = vpop.f32.mrf.mxu0
    %v304 = vadd.f32 %v110, %v303
    %305 = vmatmul.bf16.gmra.mxu0 %v224
    %v306 = vpop.f32.mrf.mxu0
    %v307 = vadd.f32 %v110, %v306
    %v308 = vpop.f32.mrf.mxu0
    %v309 = vadd.f32 %v110, %v308
    %310 = vmatmul.bf16.gmra.mxu0 %v227
    %v311 = vpop.f32.mrf.mxu0
    %v312 = vadd.f32 %v110, %v311
    %v313 = vpop.f32.mrf.mxu0
    %v314 = vadd.f32 %v110, %v313
    %315 = vdwg.mxu0
    %316 = vmatpush.bf16.msra.mxu0 0
    %317 = vmatpush.bf16.msra.mxu0 0
    %318 = vmatpush.bf16.msra.mxu0 0
    %319 = vmatpush.bf16.msra.mxu0 0
    %320 = vmatpush.bf16.msra.mxu0 %v199
    %321 = vmatpush.bf16.msra.mxu0 %v195
    %322 = vmatpush.bf16.msra.mxu0 %v191
    %323 = vmatpush.bf16.msra.mxu0 %v187
    %324 = vmatmul.bf16.gmra.mxu0 %v218
    %v325 = vpop.f32.mrf.mxu0
    %v326 = vadd.f32 %v111, %v325
    %v327 = vpop.f32.mrf.mxu0
    %v328 = vadd.f32 %v111, %v327
    %329 = vmatmul.bf16.gmra.mxu0 %v221
    %v330 = vpop.f32.mrf.mxu0
    %v331 = vadd.f32 %v111, %v330
    %v332 = vpop.f32.mrf.mxu0
    %v333 = vadd.f32 %v111, %v332
    %334 = vmatmul.bf16.gmra.mxu0 %v224
    %v335 = vpop.f32.mrf.mxu0
    %v336 = vadd.f32 %v111, %v335
    %v337 = vpop.f32.mrf.mxu0
    %v338 = vadd.f32 %v111, %v337
    %339 = vmatmul.bf16.gmra.mxu0 %v227
    %v340 = vpop.f32.mrf.mxu0
    %v341 = vadd.f32 %v111, %v340
    %v342 = vpop.f32.mrf.mxu0
    %v343 = vadd.f32 %v111, %v342
    %344 = vdwg.mxu0
    %v345 = vpack.c.bf16 %v268, %v239
    %v346 = vpack.c.bf16 %v326, %v297
    %v347 = vpack.c.bf16 %v270, %v241
    %v348 = vpack.c.bf16 %v328, %v299
    %v349 = vpack.c.bf16 %v273, %v244
    %v350 = vpack.c.bf16 %v331, %v302
    %v351 = vpack.c.bf16 %v275, %v246
    %v352 = vpack.c.bf16 %v333, %v304
    %v353 = vpack.c.bf16 %v278, %v249
    %v354 = vpack.c.bf16 %v336, %v307
    %v355 = vpack.c.bf16 %v280, %v251
    %v356 = vpack.c.bf16 %v338, %v309
    %v357 = vpack.c.bf16 %v283, %v254
    %v358 = vpack.c.bf16 %v341, %v312
    %v359 = vpack.c.bf16 %v285, %v256
    %v360 = vpack.c.bf16 %v343, %v314
    %361 = vst [vmem:[#allocation2] sm:$0xff] %v345
    %362 = vst [vmem:[#allocation2 + $0x8] sm:$0xff] %v346
    %363 = vst [vmem:[#allocation2 + $0x10] sm:$0xff] %v347
    %364 = vst [vmem:[#allocation2 + $0x18] sm:$0xff] %v348
    %365 = vst [vmem:[#allocation2 + $0x20] sm:$0xff] %v349
    %366 = vst [vmem:[#allocation2 + $0x28] sm:$0xff] %v350
    %367 = vst [vmem:[#allocation2 + $0x30] sm:$0xff] %v351
    %368 = vst [vmem:[#allocation2 + $0x38] sm:$0xff] %v352
    %369 = vst [vmem:[#allocation2 + $0x40] sm:$0xff] %v353
    %370 = vst [vmem:[#allocation2 + $0x48] sm:$0xff] %v354
    %371 = vst [vmem:[#allocation2 + $0x50] sm:$0xff] %v355
    %372 = vst [vmem:[#allocation2 + $0x58] sm:$0xff] %v356
    %373 = vst [vmem:[#allocation2 + $0x60] sm:$0xff] %v357
    %374 = vst [vmem:[#allocation2 + $0x68] sm:$0xff] %v358
    %375 = vst [vmem:[#allocation2 + $0x70] sm:$0xff] %v359
    %376 = vst [vmem:[#allocation2 + $0x78] sm:$0xff] %v360
    %v377 = vld [vmem:[#allocation2] sm:$0xff]
    %v378 = vld [vmem:[#allocation2 + $0x8] sm:$0xff]
    %v379 = vunpack.c.l.bf16 %v377
    %v380 = vunpack.c.h.bf16 %v377
    %v381 = vunpack.c.l.bf16 %v378
    %v382 = vunpack.c.h.bf16 %v378
    %v383 = vxor.u32 %v379, 2147483648
    %v384 = vmul.f32 %v383, 1.442695
    %v385 = vpow.pop %v384
    %v386 = vadd.f32 %v385, 1.0
    %v387 = vrcp.pop %v386
    %v388 = vmul.f32 %v386, %v387
    %v389 = vsub.f32 1.0, %v388
    %v390 = vmul.f32 %v387, %v389
    %v391 = vadd.f32 %v387, %v390
    %vm392 = vweird.f32 %v386
    %vm393 = vweird.f32 %v387
    %vm394 = vmor %vm392, %vm393
    %v395 = vsel %vm394, %v387, %v391
    %v396 = vand.u32 2147483647, %v386
    %vm397 = vcmp.eq.f32.partialorder %v396, 8.507059e+37
    %v398 = vand.u32 %v386, 2147483648
    %v399 = vor.u32 1.1754944e-38, %v398
    %v400 = vsel %vm397, %v399, %v395
    %v401 = vmul.f32 1.0, %v400
    %v402 = vxor.u32 %v380, 2147483648
    %v403 = vmul.f32 %v402, 1.442695
    %v404 = vpow.pop %v403
    %v405 = vadd.f32 %v404, 1.0
    %v406 = vrcp.pop %v405
    %v407 = vmul.f32 %v405, %v406
    %v408 = vsub.f32 1.0, %v407
    %v409 = vmul.f32 %v406, %v408
    %v410 = vadd.f32 %v406, %v409
    %vm411 = vweird.f32 %v405
    %vm412 = vweird.f32 %v406
    %vm413 = vmor %vm411, %vm412
    %v414 = vsel %vm413, %v406, %v410
    %v415 = vand.u32 2147483647, %v405
    %vm416 = vcmp.eq.f32.partialorder %v415, 8.507059e+37
    %v417 = vand.u32 %v405, 2147483648
    %v418 = vor.u32 1.1754944e-38, %v417
    %v419 = vsel %vm416, %v418, %v414
    %v420 = vmul.f32 1.0, %v419
    %v421 = vtanh.pop %v381
    %v422 = vxor.u32 %v382, 2147483648
    %v423 = vmul.f32 %v422, 1.442695
    %v424 = vpow.pop %v423
    %v425 = vadd.f32 %v424, 1.0
    %v426 = vrcp.pop %v425
    %v427 = vmul.f32 %v425, %v426
    %v428 = vsub.f32 1.0, %v427
    %v429 = vmul.f32 %v426, %v428
    %v430 = vadd.f32 %v426, %v429
    %vm431 = vweird.f32 %v425
    %vm432 = vweird.f32 %v426
    %vm433 = vmor %vm431, %vm432
    %v434 = vsel %vm433, %v426, %v430
    %v435 = vand.u32 2147483647, %v425
    %vm436 = vcmp.eq.f32.partialorder %v435, 8.507059e+37
    %v437 = vand.u32 %v425, 2147483648
    %v438 = vor.u32 1.1754944e-38, %v437
    %v439 = vsel %vm436, %v438, %v434
    %v440 = vmul.f32 1.0, %v439
    %v441 = vmul.f32 %v420, 0.0
    %v442 = vmul.f32 %v401, %v421
    %v443 = vadd.f32 %v441, %v442
    %v444 = vtanh.pop %v443
    %v445 = vmul.f32 %v440, %v444
    %v446 = vpack.c.bf16 %v445, %v445
    %447 = vst [vmem:[#allocation3] sm:$0xf] %v446
    loop: start=1, step=1, limit=8
    $region50: #{lstm_forward.1} parent=1 // loop_pre_header
      _
    $region51: #{lstm_forward.1} parent=1 // loop_header
      %s449 = sphi 1, %s453
      %p450 = scmp.ge.s32.totalorder %s449, 8
      %v454 = vphi %v445, %v776
      %v455 = vphi %v443, %v774
    $region52: #{lstm_forward.1} parent=1 // loop_header_branch
      %452 = sbr.rel (%p450) target = $region56
    $region53: #{lstm_forward.1} parent=1 // loop_body
      %s456 = smul.u32 %s449, 4
      %s457 = smul.addr %s456, 4
      %s458 = scalar_lea.vmem [#allocation2], %s457
      %v459 = vld [vmem:[%s458] sm:$0xff]
      %v460 = vld [vmem:[%s458 + $0x8] sm:$0xff]
      %v461 = vunpack.c.l.bf16 %v459
      %v462 = vunpack.c.h.bf16 %v459
      %v463 = vunpack.c.l.bf16 %v460
      %v464 = vunpack.c.h.bf16 %v460
      %v465 = vpack.c.bf16 %v454, %v454
      %v466 = vld [vmem:[#allocation5] sm:$0xff]
      %v467 = vld [vmem:[#allocation5 + $0x8] sm:$0xff]
      %v468 = vld [vmem:[#allocation5 + $0x10] sm:$0xff]
      %v469 = vld [vmem:[#allocation5 + $0x18] sm:$0xff]
      %v470 = vld [vmem:[#allocation5 + $0x20] sm:$0xff]
      %v471 = vld [vmem:[#allocation5 + $0x28] sm:$0xff]
      %v472 = vld [vmem:[#allocation5 + $0x30] sm:$0xff]
      %v473 = vld [vmem:[#allocation5 + $0x38] sm:$0xff]
      %v474 = vld [vmem:[#allocation5 + $0x40] sm:$0xff]
      %v475 = vld [vmem:[#allocation5 + $0x48] sm:$0xff]
      %v476 = vld [vmem:[#allocation5 + $0x50] sm:$0xff]
      %v477 = vld [vmem:[#allocation5 + $0x58] sm:$0xff]
      %v478 = vld [vmem:[#allocation5 + $0x60] sm:$0xff]
      %v479 = vld [vmem:[#allocation5 + $0x68] sm:$0xff]
      %v480 = vld [vmem:[#allocation5 + $0x70] sm:$0xff]
      %v481 = vld [vmem:[#allocation5 + $0x78] sm:$0xff]
      %v482 = vld [vmem:[#allocation5 + $0x80] sm:$0xff]
      %v483 = vld [vmem:[#allocation5 + $0x88] sm:$0xff]
      %v484 = vld [vmem:[#allocation5 + $0x90] sm:$0xff]
      %v485 = vld [vmem:[#allocation5 + $0x98] sm:$0xff]
      %v486 = vld [vmem:[#allocation5 + $0xa0] sm:$0xff]
      %v487 = vld [vmem:[#allocation5 + $0xa8] sm:$0xff]
      %v488 = vld [vmem:[#allocation5 + $0xb0] sm:$0xff]
      %v489 = vld [vmem:[#allocation5 + $0xb8] sm:$0xff]
      %v490 = vld [vmem:[#allocation5 + $0xc0] sm:$0xff]
      %v491 = vld [vmem:[#allocation5 + $0xc8] sm:$0xff]
      %v492 = vld [vmem:[#allocation5 + $0xd0] sm:$0xff]
      %v493 = vld [vmem:[#allocation5 + $0xd8] sm:$0xff]
      %v494 = vld [vmem:[#allocation5 + $0xe0] sm:$0xff]
      %v495 = vld [vmem:[#allocation5 + $0xe8] sm:$0xff]
      %v496 = vld [vmem:[#allocation5 + $0xf0] sm:$0xff]
      %v497 = vld [vmem:[#allocation5 + $0xf8] sm:$0xff]
      %v530 = vunpack.c.l.b16 %v466
      %v531 = vunpack.c.h.b16 %v466
      %v532 = vunpack.c.l.b16 %v467
      %v533 = vunpack.c.h.b16 %v467
      %v534 = vunpack.c.l.b16 %v468
      %v535 = vunpack.c.h.b16 %v468
      %v536 = vunpack.c.l.b16 %v469
      %v537 = vunpack.c.h.b16 %v469
      %v538 = vunpack.c.l.b16 %v470
      %v539 = vunpack.c.h.b16 %v470
      %v540 = vunpack.c.l.b16 %v471
      %v541 = vunpack.c.h.b16 %v471
      %v542 = vunpack.c.l.b16 %v472
      %v543 = vunpack.c.h.b16 %v472
      %v544 = vunpack.c.l.b16 %v473
      %v545 = vunpack.c.h.b16 %v473
      %v546 = vunpack.c.l.b16 %v474
      %v547 = vunpack.c.h.b16 %v474
      %v548 = vunpack.c.l.b16 %v475
      %v549 = vunpack.c.h.b16 %v475
      %v550 = vunpack.c.l.b16 %v476
      %v551 = vunpack.c.h.b16 %v476
      %v552 = vunpack.c.l.b16 %v477
      %v553 = vunpack.c.h.b16 %v477
      %v554 = vunpack.c.l.b16 %v478
      %v555 = vunpack.c.h.b16 %v478
      %v556 = vunpack.c.l.b16 %v479
      %v557 = vunpack.c.h.b16 %v479
      %v558 = vunpack.c.l.b16 %v480
      %v559 = vunpack.c.h.b16 %v480
      %v560 = vunpack.c.l.b16 %v481
      %v561 = vunpack.c.h.b16 %v481
      %v562 = vunpack.c.l.b16 %v482
      %v563 = vunpack.c.h.b16 %v482
      %v564 = vunpack.c.l.b16 %v483
      %v565 = vunpack.c.h.b16 %v483
      %v566 = vunpack.c.l.b16 %v484
      %v567 = vunpack.c.h.b16 %v484
      %v568 = vunpack.c.l.b16 %v485
      %v569 = vunpack.c.h.b16 %v485
      %v570 = vunpack.c.l.b16 %v486
      %v571 = vunpack.c.h.b16 %v486
      %v572 = vunpack.c.l.b16 %v487
      %v573 = vunpack.c.h.b16 %v487
      %v574 = vunpack.c.l.b16 %v488
      %v575 = vunpack.c.h.b16 %v488
      %v576 = vunpack.c.l.b16 %v489
      %v577 = vunpack.c.h.b16 %v489
      %v578 = vunpack.c.l.b16 %v490
      %v579 = vunpack.c.h.b16 %v490
      %v580 = vunpack.c.l.b16 %v491
      %v581 = vunpack.c.h.b16 %v491
      %v582 = vunpack.c.l.b16 %v492
      %v583 = vunpack.c.h.b16 %v492
      %v584 = vunpack.c.l.b16 %v493
      %v585 = vunpack.c.h.b16 %v493
      %v586 = vunpack.c.l.b16 %v494
      %v587 = vunpack.c.h.b16 %v494
      %v588 = vunpack.c.l.b16 %v495
      %v589 = vunpack.c.h.b16 %v495
      %v590 = vunpack.c.l.b16 %v496
      %v591 = vunpack.c.h.b16 %v496
      %v592 = vunpack.c.l.b16 %v497
      %v593 = vunpack.c.h.b16 %v497
      %v594 = vpack.c.b16 %v534, %v530
      %v595 = vpack.c.b16 %v535, %v531
      %v596 = vpack.c.b16 %v536, %v532
      %v597 = vpack.c.b16 %v537, %v533
      %v598 = vpack.c.b16 %v542, %v538
      %v599 = vpack.c.b16 %v543, %v539
      %v600 = vpack.c.b16 %v544, %v540
      %v601 = vpack.c.b16 %v545, %v541
      %v602 = vpack.c.b16 %v550, %v546
      %v603 = vpack.c.b16 %v551, %v547
      %v604 = vpack.c.b16 %v552, %v548
      %v605 = vpack.c.b16 %v553, %v549
      %v606 = vpack.c.b16 %v558, %v554
      %v607 = vpack.c.b16 %v559, %v555
      %v608 = vpack.c.b16 %v560, %v556
      %v609 = vpack.c.b16 %v561, %v557
      %v610 = vpack.c.b16 %v566, %v562
      %v611 = vpack.c.b16 %v567, %v563
      %v612 = vpack.c.b16 %v568, %v564
      %v613 = vpack.c.b16 %v569, %v565
      %v614 = vpack.c.b16 %v574, %v570
      %v615 = vpack.c.b16 %v575, %v571
      %v616 = vpack.c.b16 %v576, %v572
      %v617 = vpack.c.b16 %v577, %v573
      %v618 = vpack.c.b16 %v582, %v578
      %v619 = vpack.c.b16 %v583, %v579
      %v620 = vpack.c.b16 %v584, %v580
      %v621 = vpack.c.b16 %v585, %v581
      %v622 = vpack.c.b16 %v590, %v586
      %v623 = vpack.c.b16 %v591, %v587
      %v624 = vpack.c.b16 %v592, %v588
      %v625 = vpack.c.b16 %v593, %v589
      %658 = vmatpush.bf16.msra.mxu0 %v622
      %659 = vmatpush.bf16.msra.mxu0 %v618
      %660 = vmatpush.bf16.msra.mxu0 %v614
      %661 = vmatpush.bf16.msra.mxu0 %v610
      %662 = vmatpush.bf16.msra.mxu0 %v606
      %663 = vmatpush.bf16.msra.mxu0 %v602
      %664 = vmatpush.bf16.msra.mxu0 %v598
      %665 = vmatpush.bf16.msra.mxu0 %v594
      %666 = vmatmul.bf16.gmra.mxu0 %v465
      %v667 = vpop.f32.mrf.mxu0
      %v668 = vadd.f32 0.0, %v667
      %v669 = vpop.f32.mrf.mxu0
      %670 = vdwg.mxu0
      %671 = vmatpush.bf16.msra.mxu0 %v623
      %672 = vmatpush.bf16.msra.mxu0 %v619
      %673 = vmatpush.bf16.msra.mxu0 %v615
      %674 = vmatpush.bf16.msra.mxu0 %v611
      %675 = vmatpush.bf16.msra.mxu0 %v607
      %676 = vmatpush.bf16.msra.mxu0 %v603
      %677 = vmatpush.bf16.msra.mxu0 %v599
      %678 = vmatpush.bf16.msra.mxu0 %v595
      %679 = vmatmul.bf16.gmra.mxu0 %v465
      %v680 = vpop.f32.mrf.mxu0
      %v681 = vadd.f32 0.0, %v680
      %v682 = vpop.f32.mrf.mxu0
      %683 = vdwg.mxu0
      %684 = vmatpush.bf16.msra.mxu0 %v624
      %685 = vmatpush.bf16.msra.mxu0 %v620
      %686 = vmatpush.bf16.msra.mxu0 %v616
      %687 = vmatpush.bf16.msra.mxu0 %v612
      %688 = vmatpush.bf16.msra.mxu0 %v608
      %689 = vmatpush.bf16.msra.mxu0 %v604
      %690 = vmatpush.bf16.msra.mxu0 %v600
      %691 = vmatpush.bf16.msra.mxu0 %v596
      %692 = vmatmul.bf16.gmra.mxu0 %v465
      %v693 = vpop.f32.mrf.mxu0
      %v694 = vadd.f32 0.0, %v693
      %v695 = vpop.f32.mrf.mxu0
      %696 = vdwg.mxu0
      %697 = vmatpush.bf16.msra.mxu0 %v625
      %698 = vmatpush.bf16.msra.mxu0 %v621
      %699 = vmatpush.bf16.msra.mxu0 %v617
      %700 = vmatpush.bf16.msra.mxu0 %v613
      %701 = vmatpush.bf16.msra.mxu0 %v609
      %702 = vmatpush.bf16.msra.mxu0 %v605
      %703 = vmatpush.bf16.msra.mxu0 %v601
      %704 = vmatpush.bf16.msra.mxu0 %v597
      %705 = vmatmul.bf16.gmra.mxu0 %v465
      %v706 = vpop.f32.mrf.mxu0
      %v707 = vadd.f32 0.0, %v706
      %v708 = vpop.f32.mrf.mxu0
      %709 = vdwg.mxu0
      %v710 = vadd.f32 %v461, %v668
      %v711 = vadd.f32 %v462, %v681
      %v712 = vadd.f32 %v463, %v694
      %v713 = vadd.f32 %v464, %v707
      %v714 = vxor.u32 %v710, 2147483648
      %v715 = vmul.f32 %v714, 1.442695
      %v716 = vpow.pop %v715
      %v717 = vadd.f32 %v716, 1.0
      %v718 = vrcp.pop %v717
      %v719 = vmul.f32 %v717, %v718
      %v720 = vsub.f32 1.0, %v719
      %v721 = vmul.f32 %v718, %v720
      %v722 = vadd.f32 %v718, %v721
      %vm723 = vweird.f32 %v717
      %vm724 = vweird.f32 %v718
      %vm725 = vmor %vm723, %vm724
      %v726 = vsel %vm725, %v718, %v722
      %v727 = vand.u32 2147483647, %v717
      %vm728 = vcmp.eq.f32.partialorder %v727, 8.507059e+37
      %v729 = vand.u32 %v717, 2147483648
      %v730 = vor.u32 1.1754944e-38, %v729
      %v731 = vsel %vm728, %v730, %v726
      %v732 = vmul.f32 1.0, %v731
      %v733 = vxor.u32 %v711, 2147483648
      %v734 = vmul.f32 %v733, 1.442695
      %v735 = vpow.pop %v734
      %v736 = vadd.f32 %v735, 1.0
      %v737 = vrcp.pop %v736
      %v738 = vmul.f32 %v736, %v737
      %v739 = vsub.f32 1.0, %v738
      %v740 = vmul.f32 %v737, %v739
      %v741 = vadd.f32 %v737, %v740
      %vm742 = vweird.f32 %v736
      %vm743 = vweird.f32 %v737
      %vm744 = vmor %vm742, %vm743
      %v745 = vsel %vm744, %v737, %v741
      %v746 = vand.u32 2147483647, %v736
      %vm747 = vcmp.eq.f32.partialorder %v746, 8.507059e+37
      %v748 = vand.u32 %v736, 2147483648
      %v749 = vor.u32 1.1754944e-38, %v748
      %v750 = vsel %vm747, %v749, %v745
      %v751 = vmul.f32 1.0, %v750
      %v752 = vtanh.pop %v712
      %v753 = vxor.u32 %v713, 2147483648
      %v754 = vmul.f32 %v753, 1.442695
      %v755 = vpow.pop %v754
      %v756 = vadd.f32 %v755, 1.0
      %v757 = vrcp.pop %v756
      %v758 = vmul.f32 %v756, %v757
      %v759 = vsub.f32 1.0, %v758
      %v760 = vmul.f32 %v757, %v759
      %v761 = vadd.f32 %v757, %v760
      %vm762 = vweird.f32 %v756
      %vm763 = vweird.f32 %v757
      %vm764 = vmor %vm762, %vm763
      %v765 = vsel %vm764, %v757, %v761
      %v766 = vand.u32 2147483647, %v756
      %vm767 = vcmp.eq.f32.partialorder %v766, 8.507059e+37
      %v768 = vand.u32 %v756, 2147483648
      %v769 = vor.u32 1.1754944e-38, %v768
      %v770 = vsel %vm767, %v769, %v765
      %v771 = vmul.f32 1.0, %v770
      %v772 = vmul.f32 %v751, %v455
      %v773 = vmul.f32 %v732, %v752
      %v774 = vadd.f32 %v772, %v773
      %v775 = vtanh.pop %v774
      %v776 = vmul.f32 %v771, %v775
      %v777 = vpack.c.bf16 %v776, %v776
      %s778 = smul.addr %s449, 4
      %s779 = scalar_lea.vmem [#allocation3], %s778
      %780 = vst [vmem:[%s779] sm:$0xf] %v777
    $region54: #{lstm_forward.1} parent=1 // loop_footer
      %s453 = sadd.s32 1, %s449
    $region55: #{lstm_forward.1} parent=1 // loop_footer_branch
      %448 = sbr.rel target = $region51
    $region56: #{lstm_forward.1} parent=1 // loop_exit
      _
    %v781 = vld [vmem:[#allocation3] sm:$0xf]
    %v782 = vld [vmem:[#allocation3 + $0x4] sm:$0xf]
    %v783 = vld [vmem:[#allocation3 + $0x8] sm:$0xf]
    %v784 = vld [vmem:[#allocation3 + $0xc] sm:$0xf]
    %v785 = vld [vmem:[#allocation3 + $0x10] sm:$0xf]
    %v786 = vld [vmem:[#allocation3 + $0x14] sm:$0xf]
    %v787 = vld [vmem:[#allocation3 + $0x18] sm:$0xf]
    %v788 = vld [vmem:[#allocation3 + $0x1c] sm:$0xf]
    %v789 = vld [vmem:[#allocation7] sm:$0xff]
    %v790 = vld [vmem:[#allocation7 + $0x8] sm:$0xff]
    %v791 = vld [vmem:[#allocation7 + $0x10] sm:$0xff]
    %v792 = vld [vmem:[#allocation7 + $0x18] sm:$0xff]
    %v793 = vld [vmem:[#allocation7 + $0x20] sm:$0xff]
    %v794 = vld [vmem:[#allocation7 + $0x28] sm:$0xff]
    %v795 = vld [vmem:[#allocation7 + $0x30] sm:$0xff]
    %v796 = vld [vmem:[#allocation7 + $0x38] sm:$0xff]
    %v797 = vld [vmem:[#allocation7 + $0x40] sm:$0xff]
    %v798 = vld [vmem:[#allocation7 + $0x48] sm:$0xff]
    %v799 = vld [vmem:[#allocation7 + $0x50] sm:$0xff]
    %v800 = vld [vmem:[#allocation7 + $0x58] sm:$0xff]
    %v801 = vld [vmem:[#allocation7 + $0x60] sm:$0xff]
    %v802 = vld [vmem:[#allocation7 + $0x68] sm:$0xff]
    %v803 = vld [vmem:[#allocation7 + $0x70] sm:$0xff]
    %v804 = vld [vmem:[#allocation7 + $0x78] sm:$0xff]
    %v805 = vld [vmem:[#allocation7 + $0x80] sm:$0xff]
    %v806 = vld [vmem:[#allocation7 + $0x88] sm:$0xff]
    %v807 = vld [vmem:[#allocation7 + $0x90] sm:$0xff]
    %v808 = vld [vmem:[#allocation7 + $0x98] sm:$0xff]
    %v809 = vld [vmem:[#allocation7 + $0xa0] sm:$0xff]
    %v810 = vld [vmem:[#allocation7 + $0xa8] sm:$0xff]
    %v811 = vld [vmem:[#allocation7 + $0xb0] sm:$0xff]
    %v812 = vld [vmem:[#allocation7 + $0xb8] sm:$0xff]
    %v813 = vld [vmem:[#allocation7 + $0xc0] sm:$0xff]
    %v814 = vld [vmem:[#allocation7 + $0xc8] sm:$0xff]
    %v815 = vld [vmem:[#allocation7 + $0xd0] sm:$0xff]
    %v816 = vld [vmem:[#allocation7 + $0xd8] sm:$0xff]
    %v817 = vld [vmem:[#allocation7 + $0xe0] sm:$0xff]
    %v818 = vld [vmem:[#allocation7 + $0xe8] sm:$0xff]
    %v819 = vld [vmem:[#allocation7 + $0xf0] sm:$0xff]
    %v820 = vld [vmem:[#allocation7 + $0xf8] sm:$0xff]
    %v821 = vld [vmem:[%s6] sm:$0xf]
    %v823 = vperm.slane %v821, 0
    %v824 = vperm.slane %v821, 1
    %v825 = vperm.slane %v821, 2
    %v826 = vperm.slane %v821, 3
    %v839 = vunpack.c.l.b16 %v781
    %v840 = vunpack.c.l.b16 %v782
    %v841 = vunpack.c.l.b16 %v783
    %v842 = vunpack.c.l.b16 %v784
    %v843 = vunpack.c.l.b16 %v785
    %v844 = vunpack.c.l.b16 %v786
    %v845 = vunpack.c.l.b16 %v787
    %v846 = vunpack.c.l.b16 %v788
    %v847 = vpack.c.b16 %v840, %v839
    %v848 = vpack.c.b16 %v842, %v841
    %v849 = vpack.c.b16 %v844, %v843
    %v850 = vpack.c.b16 %v846, %v845
    %v887 = vunpack.c.l.b16 %v789
    %v888 = vunpack.c.h.b16 %v789
    %v889 = vunpack.c.l.b16 %v790
    %v890 = vunpack.c.h.b16 %v790
    %v891 = vunpack.c.l.b16 %v791
    %v892 = vunpack.c.h.b16 %v791
    %v893 = vunpack.c.l.b16 %v792
    %v894 = vunpack.c.h.b16 %v792
    %v895 = vunpack.c.l.b16 %v793
    %v896 = vunpack.c.h.b16 %v793
    %v897 = vunpack.c.l.b16 %v794
    %v898 = vunpack.c.h.b16 %v794
    %v899 = vunpack.c.l.b16 %v795
    %v900 = vunpack.c.h.b16 %v795
    %v901 = vunpack.c.l.b16 %v796
    %v902 = vunpack.c.h.b16 %v796
    %v903 = vunpack.c.l.b16 %v797
    %v904 = vunpack.c.h.b16 %v797
    %v905 = vunpack.c.l.b16 %v798
    %v906 = vunpack.c.h.b16 %v798
    %v907 = vunpack.c.l.b16 %v799
    %v908 = vunpack.c.h.b16 %v799
    %v909 = vunpack.c.l.b16 %v800
    %v910 = vunpack.c.h.b16 %v800
    %v911 = vunpack.c.l.b16 %v801
    %v912 = vunpack.c.h.b16 %v801
    %v913 = vunpack.c.l.b16 %v802
    %v914 = vunpack.c.h.b16 %v802
    %v915 = vunpack.c.l.b16 %v803
    %v916 = vunpack.c.h.b16 %v803
    %v917 = vunpack.c.l.b16 %v804
    %v918 = vunpack.c.h.b16 %v804
    %v919 = vunpack.c.l.b16 %v805
    %v920 = vunpack.c.h.b16 %v805
    %v921 = vunpack.c.l.b16 %v806
    %v922 = vunpack.c.h.b16 %v806
    %v923 = vunpack.c.l.b16 %v807
    %v924 = vunpack.c.h.b16 %v807
    %v925 = vunpack.c.l.b16 %v808
    %v926 = vunpack.c.h.b16 %v808
    %v927 = vunpack.c.l.b16 %v809
    %v928 = vunpack.c.h.b16 %v809
    %v929 = vunpack.c.l.b16 %v810
    %v930 = vunpack.c.h.b16 %v810
    %v931 = vunpack.c.l.b16 %v811
    %v932 = vunpack.c.h.b16 %v811
    %v933 = vunpack.c.l.b16 %v812
    %v934 = vunpack.c.h.b16 %v812
    %v935 = vunpack.c.l.b16 %v813
    %v936 = vunpack.c.h.b16 %v813
    %v937 = vunpack.c.l.b16 %v814
    %v938 = vunpack.c.h.b16 %v814
    %v939 = vunpack.c.l.b16 %v815
    %v940 = vunpack.c.h.b16 %v815
    %v941 = vunpack.c.l.b16 %v816
    %v942 = vunpack.c.h.b16 %v816
    %v943 = vunpack.c.l.b16 %v817
    %v944 = vunpack.c.h.b16 %v817
    %v945 = vunpack.c.l.b16 %v818
    %v946 = vunpack.c.h.b16 %v818
    %v947 = vunpack.c.l.b16 %v819
    %v948 = vunpack.c.h.b16 %v819
    %v949 = vunpack.c.l.b16 %v820
    %v950 = vunpack.c.h.b16 %v820
    %v951 = vpack.c.b16 %v891, %v887
    %v952 = vpack.c.b16 %v892, %v888
    %v953 = vpack.c.b16 %v893, %v889
    %v954 = vpack.c.b16 %v894, %v890
    %v955 = vpack.c.b16 %v899, %v895
    %v956 = vpack.c.b16 %v900, %v896
    %v957 = vpack.c.b16 %v901, %v897
    %v958 = vpack.c.b16 %v902, %v898
    %v959 = vpack.c.b16 %v907, %v903
    %v960 = vpack.c.b16 %v908, %v904
    %v961 = vpack.c.b16 %v909, %v905
    %v962 = vpack.c.b16 %v910, %v906
    %v963 = vpack.c.b16 %v915, %v911
    %v964 = vpack.c.b16 %v916, %v912
    %v965 = vpack.c.b16 %v917, %v913
    %v966 = vpack.c.b16 %v918, %v914
    %v967 = vpack.c.b16 %v923, %v919
    %v968 = vpack.c.b16 %v924, %v920
    %v969 = vpack.c.b16 %v925, %v921
    %v970 = vpack.c.b16 %v926, %v922
    %v971 = vpack.c.b16 %v931, %v927
    %v972 = vpack.c.b16 %v932, %v928
    %v973 = vpack.c.b16 %v933, %v929
    %v974 = vpack.c.b16 %v934, %v930
    %v975 = vpack.c.b16 %v939, %v935
    %v976 = vpack.c.b16 %v940, %v936
    %v977 = vpack.c.b16 %v941, %v937
    %v978 = vpack.c.b16 %v942, %v938
    %v979 = vpack.c.b16 %v947, %v943
    %v980 = vpack.c.b16 %v948, %v944
    %v981 = vpack.c.b16 %v949, %v945
    %v982 = vpack.c.b16 %v950, %v946
    %1015 = vmatpush.bf16.msra.mxu0 %v979
    %1016 = vmatpush.bf16.msra.mxu0 %v975
    %1017 = vmatpush.bf16.msra.mxu0 %v971
    %1018 = vmatpush.bf16.msra.mxu0 %v967
    %1019 = vmatpush.bf16.msra.mxu0 %v963
    %1020 = vmatpush.bf16.msra.mxu0 %v959
    %1021 = vmatpush.bf16.msra.mxu0 %v955
    %1022 = vmatpush.bf16.msra.mxu0 %v951
    %1023 = vmatmul.bf16.gmra.mxu0 %v847
    %v1024 = vpop.f32.mrf.mxu0
    %v1025 = vadd.f32 %v823, %v1024
    %v1026 = vpop.f32.mrf.mxu0
    %v1027 = vadd.f32 %v823, %v1026
    %1028 = vmatmul.bf16.gmra.mxu0 %v848
    %v1029 = vpop.f32.mrf.mxu0
    %v1030 = vadd.f32 %v823, %v1029
    %v1031 = vpop.f32.mrf.mxu0
    %v1032 = vadd.f32 %v823, %v1031
    %1033 = vmatmul.bf16.gmra.mxu0 %v849
    %v1034 = vpop.f32.mrf.mxu0
    %v1035 = vadd.f32 %v823, %v1034
    %v1036 = vpop.f32.mrf.mxu0
    %v1037 = vadd.f32 %v823, %v1036
    %1038 = vmatmul.bf16.gmra.mxu0 %v850
    %v1039 = vpop.f32.mrf.mxu0
    %v1040 = vadd.f32 %v823, %v1039
    %v1041 = vpop.f32.mrf.mxu0
    %v1042 = vadd.f32 %v823, %v1041
    %1043 = vdwg.mxu0
    %1044 = vmatpush.bf16.msra.mxu0 %v980
    %1045 = vmatpush.bf16.msra.mxu0 %v976
    %1046 = vmatpush.bf16.msra.mxu0 %v972
    %1047 = vmatpush.bf16.msra.mxu0 %v968
    %1048 = vmatpush.bf16.msra.mxu0 %v964
    %1049 = vmatpush.bf16.msra.mxu0 %v960
    %1050 = vmatpush.bf16.msra.mxu0 %v956
    %1051 = vmatpush.bf16.msra.mxu0 %v952
    %1052 = vmatmul.bf16.gmra.mxu0 %v847
    %v1053 = vpop.f32.mrf.mxu0
    %v1054 = vadd.f32 %v824, %v1053
    %v1055 = vpop.f32.mrf.mxu0
    %v1056 = vadd.f32 %v824, %v1055
    %1057 = vmatmul.bf16.gmra.mxu0 %v848
    %v1058 = vpop.f32.mrf.mxu0
    %v1059 = vadd.f32 %v824, %v1058
    %v1060 = vpop.f32.mrf.mxu0
    %v1061 = vadd.f32 %v824, %v1060
    %1062 = vmatmul.bf16.gmra.mxu0 %v849
    %v1063 = vpop.f32.mrf.mxu0
    %v1064 = vadd.f32 %v824, %v1063
    %v1065 = vpop.f32.mrf.mxu0
    %v1066 = vadd.f32 %v824, %v1065
    %1067 = vmatmul.bf16.gmra.mxu0 %v850
    %v1068 = vpop.f32.mrf.mxu0
    %v1069 = vadd.f32 %v824, %v1068
    %v1070 = vpop.f32.mrf.mxu0
    %v1071 = vadd.f32 %v824, %v1070
    %1072 = vdwg.mxu0
    %1073 = vmatpush.bf16.msra.mxu0 %v981
    %1074 = vmatpush.bf16.msra.mxu0 %v977
    %1075 = vmatpush.bf16.msra.mxu0 %v973
    %1076 = vmatpush.bf16.msra.mxu0 %v969
    %1077 = vmatpush.bf16.msra.mxu0 %v965
    %1078 = vmatpush.bf16.msra.mxu0 %v961
    %1079 = vmatpush.bf16.msra.mxu0 %v957
    %1080 = vmatpush.bf16.msra.mxu0 %v953
    %1081 = vmatmul.bf16.gmra.mxu0 %v847
    %v1082 = vpop.f32.mrf.mxu0
    %v1083 = vadd.f32 %v825, %v1082
    %v1084 = vpop.f32.mrf.mxu0
    %v1085 = vadd.f32 %v825, %v1084
    %1086 = vmatmul.bf16.gmra.mxu0 %v848
    %v1087 = vpop.f32.mrf.mxu0
    %v1088 = vadd.f32 %v825, %v1087
    %v1089 = vpop.f32.mrf.mxu0
    %v1090 = vadd.f32 %v825, %v1089
    %1091 = vmatmul.bf16.gmra.mxu0 %v849
    %v1092 = vpop.f32.mrf.mxu0
    %v1093 = vadd.f32 %v825, %v1092
    %v1094 = vpop.f32.mrf.mxu0
    %v1095 = vadd.f32 %v825, %v1094
    %1096 = vmatmul.bf16.gmra.mxu0 %v850
    %v1097 = vpop.f32.mrf.mxu0
    %v1098 = vadd.f32 %v825, %v1097
    %v1099 = vpop.f32.mrf.mxu0
    %v1100 = vadd.f32 %v825, %v1099
    %1101 = vdwg.mxu0
    %1102 = vmatpush.bf16.msra.mxu0 %v982
    %1103 = vmatpush.bf16.msra.mxu0 %v978
    %1104 = vmatpush.bf16.msra.mxu0 %v974
    %1105 = vmatpush.bf16.msra.mxu0 %v970
    %1106 = vmatpush.bf16.msra.mxu0 %v966
    %1107 = vmatpush.bf16.msra.mxu0 %v962
    %1108 = vmatpush.bf16.msra.mxu0 %v958
    %1109 = vmatpush.bf16.msra.mxu0 %v954
    %1110 = vmatmul.bf16.gmra.mxu0 %v847
    %v1111 = vpop.f32.mrf.mxu0
    %v1112 = vadd.f32 %v826, %v1111
    %v1113 = vpop.f32.mrf.mxu0
    %v1114 = vadd.f32 %v826, %v1113
    %1115 = vmatmul.bf16.gmra.mxu0 %v848
    %v1116 = vpop.f32.mrf.mxu0
    %v1117 = vadd.f32 %v826, %v1116
    %v1118 = vpop.f32.mrf.mxu0
    %v1119 = vadd.f32 %v826, %v1118
    %1120 = vmatmul.bf16.gmra.mxu0 %v849
    %v1121 = vpop.f32.mrf.mxu0
    %v1122 = vadd.f32 %v826, %v1121
    %v1123 = vpop.f32.mrf.mxu0
    %v1124 = vadd.f32 %v826, %v1123
    %1125 = vmatmul.bf16.gmra.mxu0 %v850
    %v1126 = vpop.f32.mrf.mxu0
    %v1127 = vadd.f32 %v826, %v1126
    %v1128 = vpop.f32.mrf.mxu0
    %v1129 = vadd.f32 %v826, %v1128
    %1130 = vdwg.mxu0
    %v1131 = vpack.c.bf16 %v1054, %v1025
    %v1132 = vpack.c.bf16 %v1112, %v1083
    %v1133 = vpack.c.bf16 %v1056, %v1027
    %v1134 = vpack.c.bf16 %v1114, %v1085
    %v1135 = vpack.c.bf16 %v1059, %v1030
    %v1136 = vpack.c.bf16 %v1117, %v1088
    %v1137 = vpack.c.bf16 %v1061, %v1032
    %v1138 = vpack.c.bf16 %v1119, %v1090
    %v1139 = vpack.c.bf16 %v1064, %v1035
    %v1140 = vpack.c.bf16 %v1122, %v1093
    %v1141 = vpack.c.bf16 %v1066, %v1037
    %v1142 = vpack.c.bf16 %v1124, %v1095
    %v1143 = vpack.c.bf16 %v1069, %v1040
    %v1144 = vpack.c.bf16 %v1127, %v1098
    %v1145 = vpack.c.bf16 %v1071, %v1042
    %v1146 = vpack.c.bf16 %v1129, %v1100
    %1147 = vst [vmem:[#allocation2] sm:$0xff] %v1131
    %1148 = vst [vmem:[#allocation2 + $0x8] sm:$0xff] %v1132
    %1149 = vst [vmem:[#allocation2 + $0x10] sm:$0xff] %v1133
    %1150 = vst [vmem:[#allocation2 + $0x18] sm:$0xff] %v1134
    %1151 = vst [vmem:[#allocation2 + $0x20] sm:$0xff] %v1135
    %1152 = vst [vmem:[#allocation2 + $0x28] sm:$0xff] %v1136
    %1153 = vst [vmem:[#allocation2 + $0x30] sm:$0xff] %v1137
    %1154 = vst [vmem:[#allocation2 + $0x38] sm:$0xff] %v1138
    %1155 = vst [vmem:[#allocation2 + $0x40] sm:$0xff] %v1139
    %1156 = vst [vmem:[#allocation2 + $0x48] sm:$0xff] %v1140
    %1157 = vst [vmem:[#allocation2 + $0x50] sm:$0xff] %v1141
    %1158 = vst [vmem:[#allocation2 + $0x58] sm:$0xff] %v1142
    %1159 = vst [vmem:[#allocation2 + $0x60] sm:$0xff] %v1143
    %1160 = vst [vmem:[#allocation2 + $0x68] sm:$0xff] %v1144
    %1161 = vst [vmem:[#allocation2 + $0x70] sm:$0xff] %v1145
    %1162 = vst [vmem:[#allocation2 + $0x78] sm:$0xff] %v1146
    %v1163 = vld [vmem:[#allocation2] sm:$0xff]
    %v1164 = vld [vmem:[#allocation2 + $0x8] sm:$0xff]
    %v1165 = vunpack.c.l.bf16 %v1163
    %v1166 = vunpack.c.h.bf16 %v1163
    %v1167 = vunpack.c.l.bf16 %v1164
    %v1168 = vunpack.c.h.bf16 %v1164
    %v1169 = vxor.u32 %v1165, 2147483648
    %v1170 = vmul.f32 %v1169, 1.442695
    %v1171 = vpow.pop %v1170
    %v1172 = vadd.f32 %v1171, 1.0
    %v1173 = vrcp.pop %v1172
    %v1174 = vmul.f32 %v1172, %v1173
    %v1175 = vsub.f32 1.0, %v1174
    %v1176 = vmul.f32 %v1173, %v1175
    %v1177 = vadd.f32 %v1173, %v1176
    %vm1178 = vweird.f32 %v1172
    %vm1179 = vweird.f32 %v1173
    %vm1180 = vmor %vm1178, %vm1179
    %v1181 = vsel %vm1180, %v1173, %v1177
    %v1182 = vand.u32 2147483647, %v1172
    %vm1183 = vcmp.eq.f32.partialorder %v1182, 8.507059e+37
    %v1184 = vand.u32 %v1172, 2147483648
    %v1185 = vor.u32 1.1754944e-38, %v1184
    %v1186 = vsel %vm1183, %v1185, %v1181
    %v1187 = vmul.f32 1.0, %v1186
    %v1188 = vxor.u32 %v1166, 2147483648
    %v1189 = vmul.f32 %v1188, 1.442695
    %v1190 = vpow.pop %v1189
    %v1191 = vadd.f32 %v1190, 1.0
    %v1192 = vrcp.pop %v1191
    %v1193 = vmul.f32 %v1191, %v1192
    %v1194 = vsub.f32 1.0, %v1193
    %v1195 = vmul.f32 %v1192, %v1194
    %v1196 = vadd.f32 %v1192, %v1195
    %vm1197 = vweird.f32 %v1191
    %vm1198 = vweird.f32 %v1192
    %vm1199 = vmor %vm1197, %vm1198
    %v1200 = vsel %vm1199, %v1192, %v1196
    %v1201 = vand.u32 2147483647, %v1191
    %vm1202 = vcmp.eq.f32.partialorder %v1201, 8.507059e+37
    %v1203 = vand.u32 %v1191, 2147483648
    %v1204 = vor.u32 1.1754944e-38, %v1203
    %v1205 = vsel %vm1202, %v1204, %v1200
    %v1206 = vmul.f32 1.0, %v1205
    %v1207 = vtanh.pop %v1167
    %v1208 = vxor.u32 %v1168, 2147483648
    %v1209 = vmul.f32 %v1208, 1.442695
    %v1210 = vpow.pop %v1209
    %v1211 = vadd.f32 %v1210, 1.0
    %v1212 = vrcp.pop %v1211
    %v1213 = vmul.f32 %v1211, %v1212
    %v1214 = vsub.f32 1.0, %v1213
    %v1215 = vmul.f32 %v1212, %v1214
    %v1216 = vadd.f32 %v1212, %v1215
    %vm1217 = vweird.f32 %v1211
    %vm1218 = vweird.f32 %v1212
    %vm1219 = vmor %vm1217, %vm1218
    %v1220 = vsel %vm1219, %v1212, %v1216
    %v1221 = vand.u32 2147483647, %v1211
    %vm1222 = vcmp.eq.f32.partialorder %v1221, 8.507059e+37
    %v1223 = vand.u32 %v1211, 2147483648
    %v1224 = vor.u32 1.1754944e-38, %v1223
    %v1225 = vsel %vm1222, %v1224, %v1220
    %v1226 = vmul.f32 1.0, %v1225
    %v1227 = vmul.f32 %v1206, 0.0
    %v1228 = vmul.f32 %v1187, %v1207
    %v1229 = vadd.f32 %v1227, %v1228
    %v1230 = vtanh.pop %v1229
    %v1231 = vmul.f32 %v1226, %v1230
    loop: start=1, step=1, limit=8
    $region57: #{lstm_forward.1} parent=1 // loop_pre_header
      _
    $region58: #{lstm_forward.1} parent=1 // loop_header
      %s1233 = sphi 1, %s1237
      %p1234 = scmp.ge.s32.totalorder %s1233, 8
      %v1238 = vphi %v1231, %v1560
      %v1239 = vphi %v1229, %v1558
    $region59: #{lstm_forward.1} parent=1 // loop_header_branch
      %1236 = sbr.rel (%p1234) target = $region63
    $region60: #{lstm_forward.1} parent=1 // loop_body
      %s1240 = smul.u32 %s1233, 4
      %s1241 = smul.addr %s1240, 4
      %s1242 = scalar_lea.vmem [#allocation2], %s1241
      %v1243 = vld [vmem:[%s1242] sm:$0xff]
      %v1244 = vld [vmem:[%s1242 + $0x8] sm:$0xff]
      %v1245 = vunpack.c.l.bf16 %v1243
      %v1246 = vunpack.c.h.bf16 %v1243
      %v1247 = vunpack.c.l.bf16 %v1244
      %v1248 = vunpack.c.h.bf16 %v1244
      %v1249 = vpack.c.bf16 %v1238, %v1238
      %v1250 = vld [vmem:[#allocation9] sm:$0xff]
      %v1251 = vld [vmem:[#allocation9 + $0x8] sm:$0xff]
      %v1252 = vld [vmem:[#allocation9 + $0x10] sm:$0xff]
      %v1253 = vld [vmem:[#allocation9 + $0x18] sm:$0xff]
      %v1254 = vld [vmem:[#allocation9 + $0x20] sm:$0xff]
      %v1255 = vld [vmem:[#allocation9 + $0x28] sm:$0xff]
      %v1256 = vld [vmem:[#allocation9 + $0x30] sm:$0xff]
      %v1257 = vld [vmem:[#allocation9 + $0x38] sm:$0xff]
      %v1258 = vld [vmem:[#allocation9 + $0x40] sm:$0xff]
      %v1259 = vld [vmem:[#allocation9 + $0x48] sm:$0xff]
      %v1260 = vld [vmem:[#allocation9 + $0x50] sm:$0xff]
      %v1261 = vld [vmem:[#allocation9 + $0x58] sm:$0xff]
      %v1262 = vld [vmem:[#allocation9 + $0x60] sm:$0xff]
      %v1263 = vld [vmem:[#allocation9 + $0x68] sm:$0xff]
      %v1264 = vld [vmem:[#allocation9 + $0x70] sm:$0xff]
      %v1265 = vld [vmem:[#allocation9 + $0x78] sm:$0xff]
      %v1266 = vld [vmem:[#allocation9 + $0x80] sm:$0xff]
      %v1267 = vld [vmem:[#allocation9 + $0x88] sm:$0xff]
      %v1268 = vld [vmem:[#allocation9 + $0x90] sm:$0xff]
      %v1269 = vld [vmem:[#allocation9 + $0x98] sm:$0xff]
      %v1270 = vld [vmem:[#allocation9 + $0xa0] sm:$0xff]
      %v1271 = vld [vmem:[#allocation9 + $0xa8] sm:$0xff]
      %v1272 = vld [vmem:[#allocation9 + $0xb0] sm:$0xff]
      %v1273 = vld [vmem:[#allocation9 + $0xb8] sm:$0xff]
      %v1274 = vld [vmem:[#allocation9 + $0xc0] sm:$0xff]
      %v1275 = vld [vmem:[#allocation9 + $0xc8] sm:$0xff]
      %v1276 = vld [vmem:[#allocation9 + $0xd0] sm:$0xff]
      %v1277 = vld [vmem:[#allocation9 + $0xd8] sm:$0xff]
      %v1278 = vld [vmem:[#allocation9 + $0xe0] sm:$0xff]
      %v1279 = vld [vmem:[#allocation9 + $0xe8] sm:$0xff]
      %v1280 = vld [vmem:[#allocation9 + $0xf0] sm:$0xff]
      %v1281 = vld [vmem:[#allocation9 + $0xf8] sm:$0xff]
      %v1314 = vunpack.c.l.b16 %v1250
      %v1315 = vunpack.c.h.b16 %v1250
      %v1316 = vunpack.c.l.b16 %v1251
      %v1317 = vunpack.c.h.b16 %v1251
      %v1318 = vunpack.c.l.b16 %v1252
      %v1319 = vunpack.c.h.b16 %v1252
      %v1320 = vunpack.c.l.b16 %v1253
      %v1321 = vunpack.c.h.b16 %v1253
      %v1322 = vunpack.c.l.b16 %v1254
      %v1323 = vunpack.c.h.b16 %v1254
      %v1324 = vunpack.c.l.b16 %v1255
      %v1325 = vunpack.c.h.b16 %v1255
      %v1326 = vunpack.c.l.b16 %v1256
      %v1327 = vunpack.c.h.b16 %v1256
      %v1328 = vunpack.c.l.b16 %v1257
      %v1329 = vunpack.c.h.b16 %v1257
      %v1330 = vunpack.c.l.b16 %v1258
      %v1331 = vunpack.c.h.b16 %v1258
      %v1332 = vunpack.c.l.b16 %v1259
      %v1333 = vunpack.c.h.b16 %v1259
      %v1334 = vunpack.c.l.b16 %v1260
      %v1335 = vunpack.c.h.b16 %v1260
      %v1336 = vunpack.c.l.b16 %v1261
      %v1337 = vunpack.c.h.b16 %v1261
      %v1338 = vunpack.c.l.b16 %v1262
      %v1339 = vunpack.c.h.b16 %v1262
      %v1340 = vunpack.c.l.b16 %v1263
      %v1341 = vunpack.c.h.b16 %v1263
      %v1342 = vunpack.c.l.b16 %v1264
      %v1343 = vunpack.c.h.b16 %v1264
      %v1344 = vunpack.c.l.b16 %v1265
      %v1345 = vunpack.c.h.b16 %v1265
      %v1346 = vunpack.c.l.b16 %v1266
      %v1347 = vunpack.c.h.b16 %v1266
      %v1348 = vunpack.c.l.b16 %v1267
      %v1349 = vunpack.c.h.b16 %v1267
      %v1350 = vunpack.c.l.b16 %v1268
      %v1351 = vunpack.c.h.b16 %v1268
      %v1352 = vunpack.c.l.b16 %v1269
      %v1353 = vunpack.c.h.b16 %v1269
      %v1354 = vunpack.c.l.b16 %v1270
      %v1355 = vunpack.c.h.b16 %v1270
      %v1356 = vunpack.c.l.b16 %v1271
      %v1357 = vunpack.c.h.b16 %v1271
      %v1358 = vunpack.c.l.b16 %v1272
      %v1359 = vunpack.c.h.b16 %v1272
      %v1360 = vunpack.c.l.b16 %v1273
      %v1361 = vunpack.c.h.b16 %v1273
      %v1362 = vunpack.c.l.b16 %v1274
      %v1363 = vunpack.c.h.b16 %v1274
      %v1364 = vunpack.c.l.b16 %v1275
      %v1365 = vunpack.c.h.b16 %v1275
      %v1366 = vunpack.c.l.b16 %v1276
      %v1367 = vunpack.c.h.b16 %v1276
      %v1368 = vunpack.c.l.b16 %v1277
      %v1369 = vunpack.c.h.b16 %v1277
      %v1370 = vunpack.c.l.b16 %v1278
      %v1371 = vunpack.c.h.b16 %v1278
      %v1372 = vunpack.c.l.b16 %v1279
      %v1373 = vunpack.c.h.b16 %v1279
      %v1374 = vunpack.c.l.b16 %v1280
      %v1375 = vunpack.c.h.b16 %v1280
      %v1376 = vunpack.c.l.b16 %v1281
      %v1377 = vunpack.c.h.b16 %v1281
      %v1378 = vpack.c.b16 %v1318, %v1314
      %v1379 = vpack.c.b16 %v1319, %v1315
      %v1380 = vpack.c.b16 %v1320, %v1316
      %v1381 = vpack.c.b16 %v1321, %v1317
      %v1382 = vpack.c.b16 %v1326, %v1322
      %v1383 = vpack.c.b16 %v1327, %v1323
      %v1384 = vpack.c.b16 %v1328, %v1324
      %v1385 = vpack.c.b16 %v1329, %v1325
      %v1386 = vpack.c.b16 %v1334, %v1330
      %v1387 = vpack.c.b16 %v1335, %v1331
      %v1388 = vpack.c.b16 %v1336, %v1332
      %v1389 = vpack.c.b16 %v1337, %v1333
      %v1390 = vpack.c.b16 %v1342, %v1338
      %v1391 = vpack.c.b16 %v1343, %v1339
      %v1392 = vpack.c.b16 %v1344, %v1340
      %v1393 = vpack.c.b16 %v1345, %v1341
      %v1394 = vpack.c.b16 %v1350, %v1346
      %v1395 = vpack.c.b16 %v1351, %v1347
      %v1396 = vpack.c.b16 %v1352, %v1348
      %v1397 = vpack.c.b16 %v1353, %v1349
      %v1398 = vpack.c.b16 %v1358, %v1354
      %v1399 = vpack.c.b16 %v1359, %v1355
      %v1400 = vpack.c.b16 %v1360, %v1356
      %v1401 = vpack.c.b16 %v1361, %v1357
      %v1402 = vpack.c.b16 %v1366, %v1362
      %v1403 = vpack.c.b16 %v1367, %v1363
      %v1404 = vpack.c.b16 %v1368, %v1364
      %v1405 = vpack.c.b16 %v1369, %v1365
      %v1406 = vpack.c.b16 %v1374, %v1370
      %v1407 = vpack.c.b16 %v1375, %v1371
      %v1408 = vpack.c.b16 %v1376, %v1372
      %v1409 = vpack.c.b16 %v1377, %v1373
      %1442 = vmatpush.bf16.msra.mxu0 %v1406
      %1443 = vmatpush.bf16.msra.mxu0 %v1402
      %1444 = vmatpush.bf16.msra.mxu0 %v1398
      %1445 = vmatpush.bf16.msra.mxu0 %v1394
      %1446 = vmatpush.bf16.msra.mxu0 %v1390
      %1447 = vmatpush.bf16.msra.mxu0 %v1386
      %1448 = vmatpush.bf16.msra.mxu0 %v1382
      %1449 = vmatpush.bf16.msra.mxu0 %v1378
      %1450 = vmatmul.bf16.gmra.mxu0 %v1249
      %v1451 = vpop.f32.mrf.mxu0
      %v1452 = vadd.f32 0.0, %v1451
      %v1453 = vpop.f32.mrf.mxu0
      %1454 = vdwg.mxu0
      %1455 = vmatpush.bf16.msra.mxu0 %v1407
      %1456 = vmatpush.bf16.msra.mxu0 %v1403
      %1457 = vmatpush.bf16.msra.mxu0 %v1399
      %1458 = vmatpush.bf16.msra.mxu0 %v1395
      %1459 = vmatpush.bf16.msra.mxu0 %v1391
      %1460 = vmatpush.bf16.msra.mxu0 %v1387
      %1461 = vmatpush.bf16.msra.mxu0 %v1383
      %1462 = vmatpush.bf16.msra.mxu0 %v1379
      %1463 = vmatmul.bf16.gmra.mxu0 %v1249
      %v1464 = vpop.f32.mrf.mxu0
      %v1465 = vadd.f32 0.0, %v1464
      %v1466 = vpop.f32.mrf.mxu0
      %1467 = vdwg.mxu0
      %1468 = vmatpush.bf16.msra.mxu0 %v1408
      %1469 = vmatpush.bf16.msra.mxu0 %v1404
      %1470 = vmatpush.bf16.msra.mxu0 %v1400
      %1471 = vmatpush.bf16.msra.mxu0 %v1396
      %1472 = vmatpush.bf16.msra.mxu0 %v1392
      %1473 = vmatpush.bf16.msra.mxu0 %v1388
      %1474 = vmatpush.bf16.msra.mxu0 %v1384
      %1475 = vmatpush.bf16.msra.mxu0 %v1380
      %1476 = vmatmul.bf16.gmra.mxu0 %v1249
      %v1477 = vpop.f32.mrf.mxu0
      %v1478 = vadd.f32 0.0, %v1477
      %v1479 = vpop.f32.mrf.mxu0
      %1480 = vdwg.mxu0
      %1481 = vmatpush.bf16.msra.mxu0 %v1409
      %1482 = vmatpush.bf16.msra.mxu0 %v1405
      %1483 = vmatpush.bf16.msra.mxu0 %v1401
      %1484 = vmatpush.bf16.msra.mxu0 %v1397
      %1485 = vmatpush.bf16.msra.mxu0 %v1393
      %1486 = vmatpush.bf16.msra.mxu0 %v1389
      %1487 = vmatpush.bf16.msra.mxu0 %v1385
      %1488 = vmatpush.bf16.msra.mxu0 %v1381
      %1489 = vmatmul.bf16.gmra.mxu0 %v1249
      %v1490 = vpop.f32.mrf.mxu0
      %v1491 = vadd.f32 0.0, %v1490
      %v1492 = vpop.f32.mrf.mxu0
      %1493 = vdwg.mxu0
      %v1494 = vadd.f32 %v1245, %v1452
      %v1495 = vadd.f32 %v1246, %v1465
      %v1496 = vadd.f32 %v1247, %v1478
      %v1497 = vadd.f32 %v1248, %v1491
      %v1498 = vxor.u32 %v1494, 2147483648
      %v1499 = vmul.f32 %v1498, 1.442695
      %v1500 = vpow.pop %v1499
      %v1501 = vadd.f32 %v1500, 1.0
      %v1502 = vrcp.pop %v1501
      %v1503 = vmul.f32 %v1501, %v1502
      %v1504 = vsub.f32 1.0, %v1503
      %v1505 = vmul.f32 %v1502, %v1504
      %v1506 = vadd.f32 %v1502, %v1505
      %vm1507 = vweird.f32 %v1501
      %vm1508 = vweird.f32 %v1502
      %vm1509 = vmor %vm1507, %vm1508
      %v1510 = vsel %vm1509, %v1502, %v1506
      %v1511 = vand.u32 2147483647, %v1501
      %vm1512 = vcmp.eq.f32.partialorder %v1511, 8.507059e+37
      %v1513 = vand.u32 %v1501, 2147483648
      %v1514 = vor.u32 1.1754944e-38, %v1513
      %v1515 = vsel %vm1512, %v1514, %v1510
      %v1516 = vmul.f32 1.0, %v1515
      %v1517 = vxor.u32 %v1495, 2147483648
      %v1518 = vmul.f32 %v1517, 1.442695
      %v1519 = vpow.pop %v1518
      %v1520 = vadd.f32 %v1519, 1.0
      %v1521 = vrcp.pop %v1520
      %v1522 = vmul.f32 %v1520, %v1521
      %v1523 = vsub.f32 1.0, %v1522
      %v1524 = vmul.f32 %v1521, %v1523
      %v1525 = vadd.f32 %v1521, %v1524
      %vm1526 = vweird.f32 %v1520
      %vm1527 = vweird.f32 %v1521
      %vm1528 = vmor %vm1526, %vm1527
      %v1529 = vsel %vm1528, %v1521, %v1525
      %v1530 = vand.u32 2147483647, %v1520
      %vm1531 = vcmp.eq.f32.partialorder %v1530, 8.507059e+37
      %v1532 = vand.u32 %v1520, 2147483648
      %v1533 = vor.u32 1.1754944e-38, %v1532
      %v1534 = vsel %vm1531, %v1533, %v1529
      %v1535 = vmul.f32 1.0, %v1534
      %v1536 = vtanh.pop %v1496
      %v1537 = vxor.u32 %v1497, 2147483648
      %v1538 = vmul.f32 %v1537, 1.442695
      %v1539 = vpow.pop %v1538
      %v1540 = vadd.f32 %v1539, 1.0
      %v1541 = vrcp.pop %v1540
      %v1542 = vmul.f32 %v1540, %v1541
      %v1543 = vsub.f32 1.0, %v1542
      %v1544 = vmul.f32 %v1541, %v1543
      %v1545 = vadd.f32 %v1541, %v1544
      %vm1546 = vweird.f32 %v1540
      %vm1547 = vweird.f32 %v1541
      %vm1548 = vmor %vm1546, %vm1547
      %v1549 = vsel %vm1548, %v1541, %v1545
      %v1550 = vand.u32 2147483647, %v1540
      %vm1551 = vcmp.eq.f32.partialorder %v1550, 8.507059e+37
      %v1552 = vand.u32 %v1540, 2147483648
      %v1553 = vor.u32 1.1754944e-38, %v1552
      %v1554 = vsel %vm1551, %v1553, %v1549
      %v1555 = vmul.f32 1.0, %v1554
      %v1556 = vmul.f32 %v1535, %v1239
      %v1557 = vmul.f32 %v1516, %v1536
      %v1558 = vadd.f32 %v1556, %v1557
      %v1559 = vtanh.pop %v1558
      %v1560 = vmul.f32 %v1555, %v1559
    $region61: #{lstm_forward.1} parent=1 // loop_footer
      %s1237 = sadd.s32 1, %s1233
    $region62: #{lstm_forward.1} parent=1 // loop_footer_branch
      %1232 = sbr.rel target = $region58
    $region63: #{lstm_forward.1} parent=1 // loop_exit
      _
    %v1561 = vld [vmem:[%s7] sm:$0x1]
    %v1563 = vperm.slane %v1561, 0
    %v1565 = vmul.f32 %v1238, %v1563
    %1566 = vadd.xlane.f32.xlu0 %v1565
    %v1567 = vpop.xlane.xlu0 %1566
    %v1568 = vld [vmem:[#allocation4] sm:$0x1]
    %v1570 = vperm.slane %v1568, 0
    %v1572 = vadd.f32 %v1567, %v1570
    %v1573 = vxor.u32 %v1572, 2147483648
    %v1574 = vmul.f32 %v1573, 1.442695
    %v1575 = vpow.pop %v1574
    %v1576 = vadd.f32 %v1575, 1.0
    %v1577 = vrcp.pop %v1576
    %v1578 = vmul.f32 %v1576, %v1577
    %v1579 = vsub.f32 1.0, %v1578
    %v1580 = vmul.f32 %v1577, %v1579
    %v1581 = vadd.f32 %v1577, %v1580
    %vm1582 = vweird.f32 %v1576
    %vm1583 = vweird.f32 %v1577
    %vm1584 = vmor %vm1582, %vm1583
    %v1585 = vsel %vm1584, %v1577, %v1581
    %v1586 = vand.u32 2147483647, %v1576
    %vm1587 = vcmp.eq.f32.partialorder %v1586, 8.507059e+37
    %v1588 = vand.u32 %v1576, 2147483648
    %v1589 = vor.u32 1.1754944e-38, %v1588
    %v1590 = vsel %vm1587, %v1589, %v1585
    %v1591 = vmul.f32 1.0, %v1590
    %vm1592 = vcmask 7168
    %1593 = vst.msk [vmem:[%s9] sm:$0xff] %vm1592, %v1591
    // Predicated region
    $region64: #{lstm_forward.1} parent=1 // pred_check
      _
    $region65: #{lstm_forward.1} parent=1 // pred_check_branch
      %1595 = sbr.rel (0) target = $region67
    $region66: #{lstm_forward.1} parent=1 // pred_region
      _
    $region67: #{lstm_forward.1} parent=1 // pred_fallthru
      _
    // Predicated region
    $region68: #{lstm_forward.1} parent=1 // pred_check
      _
    $region69: #{lstm_forward.1} parent=1 // pred_check_branch
      %1597 = sbr.rel (0) target = $region71
    $region70: #{lstm_forward.1} parent=1 // pred_region
      _
    $region71: #{lstm_forward.1} parent=1 // pred_fallthru
      _
    %1598 = vsyncpa [#allocation6], 1
    %1599 = vsyncpa [#allocation8], 1

</llo_original>
